<compile_context>
chip_gen: v7x
topology: tpu7x:2x2x1
jax: 0.10.0
libtpu: 0.0.40
codegen_flags: <defaults>
</compile_context>

<pallas_src>
import jax
import jax.numpy as jnp
import numpy as np
from jax.experimental import pallas as pl
from jax.experimental.pallas import tpu as pltpu


def _round_up(x, m):
    return (x + m - 1) // m * m


def _cdiv(a, b):
    return (a + b - 1) // b


# ----------------------------------------------------------------------------
# Pallas kernel: 3 matmuls + ReLU on one row tile.  Weights stay resident.
# ----------------------------------------------------------------------------
def _fusion_kernel(vis_ref, aud_ref,
                   w_vis_ref, w_aud_ref, b_h_ref,   # folded layer-1 params
                   w2_ref, b2_ref,                  # fusion MLP layer 2
                   out_ref):
    f32 = jnp.float32
    cdt = w_vis_ref.dtype                           # compute dtype (bf16 or f32)

    vis = vis_ref[...].astype(cdt)                  # no-op when inputs already bf16
    aud = aud_ref[...].astype(cdt)

    # h = relu(vis @ W_vis + aud @ W_aud + b_h)   (f32 accumulation on the MXU)
    h = (jnp.dot(vis, w_vis_ref[...], preferred_element_type=f32)
         + jnp.dot(aud, w_aud_ref[...], preferred_element_type=f32)
         + b_h_ref[...])
    h = jnp.maximum(h, 0.0).astype(cdt)

    out = jnp.dot(h, w2_ref[...], preferred_element_type=f32) + b2_ref[...]
    out_ref[...] = out.astype(out_ref.dtype)


# ----------------------------------------------------------------------------
# VMEM accounting + generation-aware tile / vmem-limit selection.
# ----------------------------------------------------------------------------
def _vmem_step_bytes(tile_m, vdim, adim, fdim, fdim_pad,
                     in_bytes, w_bytes, out_bytes, w_bufs):
    rows_in = 2 * tile_m * (vdim + adim) * in_bytes           # double-buffered inputs
    rows_out = 2 * tile_m * fdim_pad * out_bytes              # double-buffered output
    weights = w_bufs * ((vdim + adim) * fdim + fdim * fdim_pad) * w_bytes
    biases = w_bufs * (fdim + fdim_pad) * 4                   # biases kept in f32
    return rows_in + rows_out + weights + biases


def _choose_tile_and_vmem(n, vdim, adim, fdim, fdim_pad,
                          in_bytes, w_bytes, out_bytes, w_bufs, tile_m_req):
    try:
        vmem_cap = int(pltpu.get_tpu_info().vmem_capacity_bytes)
    except Exception:
        vmem_cap = 64 << 20                                    # conservative (v7x per-TC)
    budget = min(100 << 20, int(0.75 * vmem_cap))              # <=~100MiB v5e/v6e, ~48MiB v7x

    if tile_m_req is None:
        tile_m = 1024 if vmem_cap >= (100 << 20) else 512      # big tiles on 128MiB parts
        # >=2 grid steps so v7x's two TensorCores both get work; ~0.35us cost elsewhere.
        tile_m = min(tile_m, _round_up(_cdiv(max(n, 1), 2), 8))
    else:
        tile_m = tile_m_req
    tile_m = max(8, _round_up(tile_m, 8))

    while tile_m > 8 and 1.25 * _vmem_step_bytes(
            tile_m, vdim, adim, fdim, fdim_pad,
            in_bytes, w_bytes, out_bytes, w_bufs) > budget:
        tile_m = max(8, _round_up(tile_m // 2, 8))

    need = int(1.25 * _vmem_step_bytes(tile_m, vdim, adim, fdim, fdim_pad,
                                       in_bytes, w_bytes, out_bytes, w_bufs))
    vmem_limit = int(min(budget, max(need, 32 << 20)))
    return tile_m, vmem_limit


# ----------------------------------------------------------------------------
# Wrapper: row-tiled grid (ragged last block, no pre-padding), resident weights.
# ----------------------------------------------------------------------------
def cross_modal_fusion(vis, aud, folded, *, tile_m=None, out_dtype=None):
    n, vdim = vis.shape
    adim = aud.shape[1]
    fdim = folded["fdim"]                 # logical fusion dim
    fdim_pad = folded["w2"].shape[1]      # lane-padded (multiple of 128) output dim
    w_dtype = folded["w_vis"].dtype

    if out_dtype is None:
        out_dtype = jnp.bfloat16 if w_dtype == jnp.bfloat16 else jnp.float32

    if n == 0:
        return jnp.zeros((0, fdim), out_dtype)

    in_bytes = max(jnp.dtype(vis.dtype).itemsize, jnp.dtype(aud.dtype).itemsize)
    w_bytes = jnp.dtype(w_dtype).itemsize
    out_bytes = jnp.dtype(out_dtype).itemsize

    out = None
    # Attempt single-buffered resident weights first (pl.Buffered(1)); fall back
    # to default double-buffering if this JAX/Mosaic build rejects pipeline_mode.
    for w_bufs in (1, 2):
        tm, vmem_limit = _choose_tile_and_vmem(
            n, vdim, adim, fdim, fdim_pad, in_bytes, w_bytes, out_bytes, w_bufs, tile_m)
        grid = (_cdiv(n, tm),)

        def row_spec(d, tm=tm):
            return pl.BlockSpec((tm, d), lambda i: (i, 0))

        def resident_spec(r, c, single=(w_bufs == 1)):
            # Constant block index -> fetched once, stays resident across the grid.
            if single:
                return pl.BlockSpec((r, c), lambda i: (0, 0),
                                    pipeline_mode=pl.Buffered(1))
            return pl.BlockSpec((r, c), lambda i: (0, 0))

        try:
            out = pl.pallas_call(
                _fusion_kernel,
                out_shape=jax.ShapeDtypeStruct((n, fdim_pad), out_dtype),
                grid=grid,
                in_specs=[
                    row_spec(vdim),                     # visual rows   [tm, vdim]
                    row_spec(adim),                     # audio rows    [tm, adim]
                    resident_spec(vdim, fdim),          # W_vis
                    resident_spec(adim, fdim),          # W_aud
                    resident_spec(1, fdim),             # b_h (f32)
                    resident_spec(fdim, fdim_pad),      # W2
                    resident_spec(1, fdim_pad),         # b2 (f32)
                ],
                out_specs=row_spec(fdim_pad),
                compiler_params=pltpu.CompilerParams(
                    dimension_semantics=("parallel",),   # shard rows across TCs (v7x)
                    vmem_limit_bytes=vmem_limit),
            )(vis, aud, folded["w_vis"], folded["w_aud"], folded["b_h"],
              folded["w2"], folded["b2"])
            break
        except Exception:
            if w_bufs == 2:
                raise
            continue

    if fdim_pad != fdim:
        out = out[:, :fdim]
    return out


# ----------------------------------------------------------------------------
# Offline weight folding (done once, outside the kernel).
#   attn_out = a_proj @ (Wv@Wo) + (bv@Wo + bo)          (softmax-of-1 identity)
#   h_pre    = vis @ (Wvp@W1v) + aud @ (Wap@Wv@Wo@W1a) + b_h
# W2/b2 output columns are zero-padded to a multiple of 128 for lane-dense stores.
# ----------------------------------------------------------------------------
def fold_params(params, compute_dtype=jnp.bfloat16):
    f32 = jnp.float32
    wvp, bvp = params["wvp"].astype(f32), params["bvp"].astype(f32)
    wap, bap = params["wap"].astype(f32), params["bap"].astype(f32)
    wv, bv = params["wv"].astype(f32), params["bv"].astype(f32)
    wo, bo = params["wo"].astype(f32), params["bo"].astype(f32)
    w1v, w1a, b1 = (params["w1v"].astype(f32), params["w1a"].astype(f32),
                    params["b1"].astype(f32))
    w2, b2 = params["w2"].astype(f32), params["b2"].astype(f32)

    w_va = wv @ wo                    # attention V + out-projection fold
    b_va = bv @ wo + bo

    w_vis = wvp @ w1v                 # visual path straight into MLP layer 1
    w_aud = wap @ (w_va @ w1a)        # audio: proj -> V -> out_proj -> MLP-1
    b_h = bvp @ w1v + (bap @ w_va + b_va) @ w1a + b1

    fdim = w2.shape[1]
    fdim_pad = _round_up(fdim, 128)
    if fdim_pad != fdim:
        w2 = jnp.pad(w2, ((0, 0), (0, fdim_pad - fdim)))
        b2 = jnp.pad(b2, ((0, 0), (0, fdim_pad - fdim)))

    return dict(
        w_vis=w_vis.astype(compute_dtype),
        w_aud=w_aud.astype(compute_dtype),
        b_h=b_h.astype(f32),
        w2=w2.astype(compute_dtype),
        b2=b2.astype(f32),
        fdim=fdim,
    )


# ----------------------------------------------------------------------------
# Deterministic parameter initialization (PyTorch-like uniform ranges).
# Weights stored already transposed to [in_features, out_features].
# ----------------------------------------------------------------------------
def init_params(key, visual_dim, audio_dim, fusion_dim):
    keys = jax.random.split(key, 16)

    def lin(kw, kb, fan_in, fan_out):
        bound = 1.0 / np.sqrt(fan_in)
        w = jax.random.uniform(kw, (fan_in, fan_out), jnp.float32, -bound, bound)
        b = jax.random.uniform(kb, (1, fan_out), jnp.float32, -bound, bound)
        return w, b

    wvp, bvp = lin(keys[0], keys[1], visual_dim, fusion_dim)
    wap, bap = lin(keys[2], keys[3], audio_dim, fusion_dim)
    wq, bq = lin(keys[4], keys[5], fusion_dim, fusion_dim)
    wk, bk = lin(keys[6], keys[7], fusion_dim, fusion_dim)
    wv, bv = lin(keys[8], keys[9], fusion_dim, fusion_dim)
    wo, bo = lin(keys[10], keys[11], fusion_dim, fusion_dim)
    w1, b1 = lin(keys[12], keys[13], 2 * fusion_dim, fusion_dim)
    w2, b2 = lin(keys[14], keys[15], fusion_dim, fusion_dim)

    return dict(
        wvp=wvp, bvp=bvp, wap=wap, bap=bap,
        wq=wq, bq=bq, wk=wk, bk=bk, wv=wv, bv=bv, wo=wo, bo=bo,
        w1v=w1[:fusion_dim], w1a=w1[fusion_dim:], b1=b1, w2=w2, b2=b2,
    )


# ----------------------------------------------------------------------------
# Pure-JAX reference: runs the FULL multi-head-attention math (Q/K projections
# and softmax over the singleton key axis), no folding.
# ----------------------------------------------------------------------------
def reference(vis, aud, params, num_heads=8):
    v_proj = vis @ params["wvp"] + params["bvp"]
    a_proj = aud @ params["wap"] + params["bap"]
    n, f = v_proj.shape
    hd = f // num_heads

    q = v_proj @ params["wq"] + params["bq"]
    k = a_proj @ params["wk"] + params["bk"]
    v = a_proj @ params["wv"] + params["bv"]

    qh = q.reshape(n, num_heads, 1, hd)
    kh = k.reshape(n, num_heads, 1, hd)
    vh = v.reshape(n, num_heads, 1, hd)
    scores = jnp.einsum("nhqd,nhkd->nhqk", qh, kh) / np.sqrt(hd)
    weights = jax.nn.softmax(scores, axis=-1)            # == 1.0 everywhere
    attn = jnp.einsum("nhqk,nhkd->nhqd", weights, vh).reshape(n, f)
    attn_out = attn @ params["wo"] + params["bo"]

    cat = jnp.concatenate([v_proj, attn_out], axis=1)
    w1 = jnp.concatenate([params["w1v"], params["w1a"]], axis=0)
    h = jax.nn.relu(cat @ w1 + params["b1"])
    return h @ params["w2"] + params["b2"]


if __name__ == "__main__":
    # Small demo shapes (fusion_dim divisible by num_heads=8 and lane-width 128).
    # N deliberately NOT a multiple of the tile: exercises the ragged last block
    # (no wrapper padding) and a multi-step grid.
    N, VISUAL_DIM, AUDIO_DIM, FUSION_DIM = 40, 64, 32, 128
    TILE_M = 16

    key = jax.random.PRNGKey(0)
    k_vis, k_aud, k_params = jax.random.split(key, 3)

    visual_features = jax.random.normal(k_vis, (N, VISUAL_DIM), jnp.float32)
    audio_features = jax.random.normal(k_aud, (N, AUDIO_DIM), jnp.float32)
    params = init_params(k_params, VISUAL_DIM, AUDIO_DIM, FUSION_DIM)

    ref = jax.block_until_ready(reference(visual_features, audio_features, params))

    # f32 folded weights + f32 activations/output: tight check of the fold,
    # ragged tiling and lane-padded output path.
    folded_f32 = fold_params(params, jnp.float32)
    out_f32 = jax.block_until_ready(
        cross_modal_fusion(visual_features, audio_features, folded_f32,
                           tile_m=TILE_M, out_dtype=jnp.float32))
    np.testing.assert_allclose(np.asarray(out_f32), np.asarray(ref),
                               rtol=2e-4, atol=2e-4)

    # Production path: bf16 activations already resident in HBM, bf16 weights,
    # bf16 output (halves HBM traffic of this bandwidth-bound kernel).
    folded_bf16 = fold_params(params, jnp.bfloat16)
    vis_bf16 = visual_features.astype(jnp.bfloat16)
    aud_bf16 = audio_features.astype(jnp.bfloat16)
    out_bf16 = jax.block_until_ready(
        cross_modal_fusion(vis_bf16, aud_bf16, folded_bf16, tile_m=TILE_M))
    np.testing.assert_allclose(np.asarray(out_bf16.astype(jnp.float32)),
                               np.asarray(ref), rtol=5e-2, atol=1e-1)

    # Auto tile / VMEM selection path (no explicit tile_m).
    out_auto = jax.block_until_ready(
        cross_modal_fusion(vis_bf16, aud_bf16, folded_bf16))
    np.testing.assert_allclose(np.asarray(out_auto.astype(jnp.float32)),
                               np.asarray(ref), rtol=5e-2, atol=1e-1)

    print("KERNEL_OK")
</pallas_src>

<mosaic_0001>
module attributes {stable_mosaic.version = 11 : i64} {
  func.func @_fusion_kernel(%arg0: i32, %arg1: memref<16x64xf32, #tpu.memory_space<vmem>>, %arg2: memref<16x32xf32, #tpu.memory_space<vmem>>, %arg3: memref<64x128xf32, #tpu.memory_space<vmem>>, %arg4: memref<32x128xf32, #tpu.memory_space<vmem>>, %arg5: memref<1x128xf32, #tpu.memory_space<vmem>>, %arg6: memref<128x128xf32, #tpu.memory_space<vmem>>, %arg7: memref<1x128xf32, #tpu.memory_space<vmem>>, %arg8: memref<16x128xf32, #tpu.memory_space<vmem>>) attributes {dimension_semantics = [#tpu.dimension_semantics<parallel>], iteration_bounds = array<i64: 3>, scalar_prefetch = 0 : i64, scratch_operands = 0 : i64, tpu.core_type = #tpu.core_type<tc>, window_params = [{transform_indices = @transform_0, window_bounds = array<i64: 16, 64>}, {transform_indices = @transform_1, window_bounds = array<i64: 16, 32>}, {pipeline_mode = #tpu.pipeline_mode<synchronous>, transform_indices = @transform_2, window_bounds = array<i64: 64, 128>}, {pipeline_mode = #tpu.pipeline_mode<synchronous>, transform_indices = @transform_3, window_bounds = array<i64: 32, 128>}, {pipeline_mode = #tpu.pipeline_mode<synchronous>, transform_indices = @transform_4, window_bounds = array<i64: 1, 128>}, {pipeline_mode = #tpu.pipeline_mode<synchronous>, transform_indices = @transform_5, window_bounds = array<i64: 128, 128>}, {pipeline_mode = #tpu.pipeline_mode<synchronous>, transform_indices = @transform_6, window_bounds = array<i64: 1, 128>}, {transform_indices = @transform_7, window_bounds = array<i64: 16, 128>}]} {
    %c0 = arith.constant 0 : index
    %c0_0 = arith.constant 0 : index
    %0 = vector.load %arg1[%c0, %c0_0] : memref<16x64xf32, #tpu.memory_space<vmem>>, vector<16x64xf32>
    %c0_1 = arith.constant 0 : index
    %c0_2 = arith.constant 0 : index
    %1 = vector.load %arg2[%c0_1, %c0_2] : memref<16x32xf32, #tpu.memory_space<vmem>>, vector<16x32xf32>
    %c0_3 = arith.constant 0 : index
    %c0_4 = arith.constant 0 : index
    %2 = vector.load %arg3[%c0_3, %c0_4] : memref<64x128xf32, #tpu.memory_space<vmem>>, vector<64x128xf32>
    %cst = arith.constant dense<0.000000e+00> : vector<16x128xf32>
    %3 = tpu.matmul %0, %2, %cst {dimension_numbers = #tpu.dot_dimension_numbers<[1], [0], [0], [1], [0, 0, 1, 1], [], []>} : vector<16x64xf32>, vector<64x128xf32>, vector<16x128xf32> -> vector<16x128xf32>
    %c0_5 = arith.constant 0 : index
    %c0_6 = arith.constant 0 : index
    %4 = vector.load %arg4[%c0_5, %c0_6] : memref<32x128xf32, #tpu.memory_space<vmem>>, vector<32x128xf32>
    %cst_7 = arith.constant dense<0.000000e+00> : vector<16x128xf32>
    %5 = tpu.matmul %1, %4, %cst_7 {dimension_numbers = #tpu.dot_dimension_numbers<[1], [0], [0], [1], [0, 0, 1, 1], [], []>} : vector<16x32xf32>, vector<32x128xf32>, vector<16x128xf32> -> vector<16x128xf32>
    %6 = arith.addf %3, %5 : vector<16x128xf32>
    %c0_8 = arith.constant 0 : index
    %c0_9 = arith.constant 0 : index
    %7 = vector.load %arg5[%c0_8, %c0_9] : memref<1x128xf32, #tpu.memory_space<vmem>>, vector<1x128xf32>
    %8 = vector.broadcast %7 : vector<1x128xf32> to vector<16x128xf32>
    %9 = arith.addf %6, %8 : vector<16x128xf32>
    %cst_10 = arith.constant 0.000000e+00 : f32
    %10 = vector.broadcast %cst_10 : f32 to vector<16x128xf32>
    %11 = arith.maximumf %9, %10 : vector<16x128xf32>
    %c0_11 = arith.constant 0 : index
    %c0_12 = arith.constant 0 : index
    %12 = vector.load %arg6[%c0_11, %c0_12] : memref<128x128xf32, #tpu.memory_space<vmem>>, vector<128x128xf32>
    %cst_13 = arith.constant dense<0.000000e+00> : vector<16x128xf32>
    %13 = tpu.matmul %11, %12, %cst_13 {dimension_numbers = #tpu.dot_dimension_numbers<[1], [0], [0], [1], [0, 0, 1, 1], [], []>} : vector<16x128xf32>, vector<128x128xf32>, vector<16x128xf32> -> vector<16x128xf32>
    %c0_14 = arith.constant 0 : index
    %c0_15 = arith.constant 0 : index
    %14 = vector.load %arg7[%c0_14, %c0_15] : memref<1x128xf32, #tpu.memory_space<vmem>>, vector<1x128xf32>
    %15 = vector.broadcast %14 : vector<1x128xf32> to vector<16x128xf32>
    %16 = arith.addf %13, %15 : vector<16x128xf32>
    %c0_16 = arith.constant 0 : index
    %c0_17 = arith.constant 0 : index
    %17 = vector.load %arg8[%c0_16, %c0_17] : memref<16x128xf32, #tpu.memory_space<vmem>>, vector<16x128xf32>
    tpu.vector_store %arg8[%c0_16, %c0_17], %16 {strides = array<i32>} : memref<16x128xf32, #tpu.memory_space<vmem>>, vector<16x128xf32>,
    return
  }
  func.func @transform_0(%arg0: i32) -> (i32, i32) {
    %c0_i32 = arith.constant 0 : i32
    %c0_i32_0 = arith.constant 0 : i32
    return %arg0, %c0_i32 : i32, i32
  }
  func.func @transform_1(%arg0: i32) -> (i32, i32) {
    %c0_i32 = arith.constant 0 : i32
    %c0_i32_0 = arith.constant 0 : i32
    return %arg0, %c0_i32 : i32, i32
  }
  func.func @transform_2(%arg0: i32) -> (i32, i32) {
    %c0_i32 = arith.constant 0 : i32
    %c0_i32_0 = arith.constant 0 : i32
    %c0_i32_1 = arith.constant 0 : i32
    return %c0_i32, %c0_i32_0 : i32, i32
  }
  func.func @transform_3(%arg0: i32) -> (i32, i32) {
    %c0_i32 = arith.constant 0 : i32
    %c0_i32_0 = arith.constant 0 : i32
    %c0_i32_1 = arith.constant 0 : i32
    return %c0_i32, %c0_i32_0 : i32, i32
  }
  func.func @transform_4(%arg0: i32) -> (i32, i32) {
    %c0_i32 = arith.constant 0 : i32
    %c0_i32_0 = arith.constant 0 : i32
    %c0_i32_1 = arith.constant 0 : i32
    return %c0_i32, %c0_i32_0 : i32, i32
  }
  func.func @transform_5(%arg0: i32) -> (i32, i32) {
    %c0_i32 = arith.constant 0 : i32
    %c0_i32_0 = arith.constant 0 : i32
    %c0_i32_1 = arith.constant 0 : i32
    return %c0_i32, %c0_i32_0 : i32, i32
  }
  func.func @transform_6(%arg0: i32) -> (i32, i32) {
    %c0_i32 = arith.constant 0 : i32
    %c0_i32_0 = arith.constant 0 : i32
    %c0_i32_1 = arith.constant 0 : i32
    return %c0_i32, %c0_i32_0 : i32, i32
  }
  func.func @transform_7(%arg0: i32) -> (i32, i32) {
    %c0_i32 = arith.constant 0 : i32
    %c0_i32_0 = arith.constant 0 : i32
    return %arg0, %c0_i32 : i32, i32
  }
}

module attributes {stable_mosaic.version = 11 : i64} {
  func.func @_fusion_kernel(%arg0: i32, %arg1: memref<16x64xf32, #tpu.memory_space<vmem>>, %arg2: memref<16x32xf32, #tpu.memory_space<vmem>>, %arg3: memref<64x128xf32, #tpu.memory_space<vmem>>, %arg4: memref<32x128xf32, #tpu.memory_space<vmem>>, %arg5: memref<1x128xf32, #tpu.memory_space<vmem>>, %arg6: memref<128x128xf32, #tpu.memory_space<vmem>>, %arg7: memref<1x128xf32, #tpu.memory_space<vmem>>, %arg8: memref<16x128xf32, #tpu.memory_space<vmem>>) attributes {dimension_semantics = [#tpu.dimension_semantics<parallel>], iteration_bounds = array<i64: 3>, scalar_prefetch = 0 : i64, scratch_operands = 0 : i64, tpu.core_type = #tpu.core_type<tc>, window_params = [{transform_indices = @transform_0, window_bounds = array<i64: 16, 64>}, {transform_indices = @transform_1, window_bounds = array<i64: 16, 32>}, {pipeline_mode = #tpu.pipeline_mode<synchronous>, transform_indices = @transform_2, window_bounds = array<i64: 64, 128>}, {pipeline_mode = #tpu.pipeline_mode<synchronous>, transform_indices = @transform_3, window_bounds = array<i64: 32, 128>}, {pipeline_mode = #tpu.pipeline_mode<synchronous>, transform_indices = @transform_4, window_bounds = array<i64: 1, 128>}, {pipeline_mode = #tpu.pipeline_mode<synchronous>, transform_indices = @transform_5, window_bounds = array<i64: 128, 128>}, {pipeline_mode = #tpu.pipeline_mode<synchronous>, transform_indices = @transform_6, window_bounds = array<i64: 1, 128>}, {transform_indices = @transform_7, window_bounds = array<i64: 16, 128>}]} {
    %c0 = arith.constant 0 : index
    %c0_0 = arith.constant 0 : index
    %0 = vector.load %arg1[%c0, %c0_0] : memref<16x64xf32, #tpu.memory_space<vmem>>, vector<16x64xf32>
    %c0_1 = arith.constant 0 : index
    %c0_2 = arith.constant 0 : index
    %1 = vector.load %arg2[%c0_1, %c0_2] : memref<16x32xf32, #tpu.memory_space<vmem>>, vector<16x32xf32>
    %c0_3 = arith.constant 0 : index
    %c0_4 = arith.constant 0 : index
    %2 = vector.load %arg3[%c0_3, %c0_4] : memref<64x128xf32, #tpu.memory_space<vmem>>, vector<64x128xf32>
    %cst = arith.constant dense<0.000000e+00> : vector<16x128xf32>
    %3 = tpu.matmul %0, %2, %cst {dimension_numbers = #tpu.dot_dimension_numbers<[1], [0], [0], [1], [0, 0, 1, 1], [], []>} : vector<16x64xf32>, vector<64x128xf32>, vector<16x128xf32> -> vector<16x128xf32>
    %c0_5 = arith.constant 0 : index
    %c0_6 = arith.constant 0 : index
    %4 = vector.load %arg4[%c0_5, %c0_6] : memref<32x128xf32, #tpu.memory_space<vmem>>, vector<32x128xf32>
    %cst_7 = arith.constant dense<0.000000e+00> : vector<16x128xf32>
    %5 = tpu.matmul %1, %4, %cst_7 {dimension_numbers = #tpu.dot_dimension_numbers<[1], [0], [0], [1], [0, 0, 1, 1], [], []>} : vector<16x32xf32>, vector<32x128xf32>, vector<16x128xf32> -> vector<16x128xf32>
    %6 = arith.addf %3, %5 : vector<16x128xf32>
    %c0_8 = arith.constant 0 : index
    %c0_9 = arith.constant 0 : index
    %7 = vector.load %arg5[%c0_8, %c0_9] : memref<1x128xf32, #tpu.memory_space<vmem>>, vector<1x128xf32>
    %8 = vector.broadcast %7 : vector<1x128xf32> to vector<16x128xf32>
    %9 = arith.addf %6, %8 : vector<16x128xf32>
    %cst_10 = arith.constant 0.000000e+00 : f32
    %10 = vector.broadcast %cst_10 : f32 to vector<16x128xf32>
    %11 = arith.maximumf %9, %10 : vector<16x128xf32>
    %c0_11 = arith.constant 0 : index
    %c0_12 = arith.constant 0 : index
    %12 = vector.load %arg6[%c0_11, %c0_12] : memref<128x128xf32, #tpu.memory_space<vmem>>, vector<128x128xf32>
    %cst_13 = arith.constant dense<0.000000e+00> : vector<16x128xf32>
    %13 = tpu.matmul %11, %12, %cst_13 {dimension_numbers = #tpu.dot_dimension_numbers<[1], [0], [0], [1], [0, 0, 1, 1], [], []>} : vector<16x128xf32>, vector<128x128xf32>, vector<16x128xf32> -> vector<16x128xf32>
    %c0_14 = arith.constant 0 : index
    %c0_15 = arith.constant 0 : index
    %14 = vector.load %arg7[%c0_14, %c0_15] : memref<1x128xf32, #tpu.memory_space<vmem>>, vector<1x128xf32>
    %15 = vector.broadcast %14 : vector<1x128xf32> to vector<16x128xf32>
    %16 = arith.addf %13, %15 : vector<16x128xf32>
    %c0_16 = arith.constant 0 : index
    %c0_17 = arith.constant 0 : index
    %17 = vector.load %arg8[%c0_16, %c0_17] : memref<16x128xf32, #tpu.memory_space<vmem>>, vector<16x128xf32>
    tpu.vector_store %arg8[%c0_16, %c0_17], %16 {strides = array<i32>} : memref<16x128xf32, #tpu.memory_space<vmem>>, vector<16x128xf32>,
    return
  }
  func.func @transform_0(%arg0: i32) -> (i32, i32) {
    %c0_i32 = arith.constant 0 : i32
    %c0_i32_0 = arith.constant 0 : i32
    return %arg0, %c0_i32 : i32, i32
  }
  func.func @transform_1(%arg0: i32) -> (i32, i32) {
    %c0_i32 = arith.constant 0 : i32
    %c0_i32_0 = arith.constant 0 : i32
    return %arg0, %c0_i32 : i32, i32
  }
  func.func @transform_2(%arg0: i32) -> (i32, i32) {
    %c0_i32 = arith.constant 0 : i32
    %c0_i32_0 = arith.constant 0 : i32
    %c0_i32_1 = arith.constant 0 : i32
    return %c0_i32, %c0_i32_0 : i32, i32
  }
  func.func @transform_3(%arg0: i32) -> (i32, i32) {
    %c0_i32 = arith.constant 0 : i32
    %c0_i32_0 = arith.constant 0 : i32
    %c0_i32_1 = arith.constant 0 : i32
    return %c0_i32, %c0_i32_0 : i32, i32
  }
  func.func @transform_4(%arg0: i32) -> (i32, i32) {
    %c0_i32 = arith.constant 0 : i32
    %c0_i32_0 = arith.constant 0 : i32
    %c0_i32_1 = arith.constant 0 : i32
    return %c0_i32, %c0_i32_0 : i32, i32
  }
  func.func @transform_5(%arg0: i32) -> (i32, i32) {
    %c0_i32 = arith.constant 0 : i32
    %c0_i32_0 = arith.constant 0 : i32
    %c0_i32_1 = arith.constant 0 : i32
    return %c0_i32, %c0_i32_0 : i32, i32
  }
  func.func @transform_6(%arg0: i32) -> (i32, i32) {
    %c0_i32 = arith.constant 0 : i32
    %c0_i32_0 = arith.constant 0 : i32
    %c0_i32_1 = arith.constant 0 : i32
    return %c0_i32, %c0_i32_0 : i32, i32
  }
  func.func @transform_7(%arg0: i32) -> (i32, i32) {
    %c0_i32 = arith.constant 0 : i32
    %c0_i32_0 = arith.constant 0 : i32
    return %arg0, %c0_i32 : i32, i32
  }
}

</mosaic_0001>

<llo_original>
// kernel: tpu_custom_call.1
$region0: #{tpu_custom_call.1}
  #allocation0 [shape = 'u32[]', space=smem, size = 0x4, offset = 0x4, fixed_abs, tag = 'smem constant byte address 0x4 - core index']
  #allocation1 [shape = 'u32[144,128]{1,0:T(1,128)}', space=vmem, size = 0x12000, scoped, tag = 'internal scratch']
  %s0 = inlined_call_operand.hbm [shape: f32[40,64], index: 0, kind: input, shape index: {}]
  %s1 = inlined_call_operand.vmem [shape: f32[40,32], index: 1, kind: input, shape index: {}]
  %s2 = inlined_call_operand.vmem [shape: f32[64,128], index: 2, kind: input, shape index: {}]
  %s3 = inlined_call_operand.hbm [shape: f32[32,128], index: 3, kind: input, shape index: {}]
  %s4 = inlined_call_operand.vmem [shape: f32[1,128], index: 4, kind: input, shape index: {}]
  %s5 = inlined_call_operand.hbm [shape: f32[128,128], index: 5, kind: input, shape index: {}]
  %s6 = inlined_call_operand.vmem [shape: f32[1,128], index: 6, kind: input, shape index: {}]
  %s7 = inlined_call_operand.hbm [shape: f32[40,128], index: 7, kind: output, shape index: {}]
  %s8 = sld [smem:[#allocation0]]
  $region73: #{tpu_custom_call.1} parent=0
    _
  %s10 = ssub.s32 1, %s8
  %s11 = scalar_select 0, %s10, %s8
  $region1: #{tpu_custom_call.1} parent=0
    #allocation2 [shape = 'u8[16384]{0}', space=vmem, size = 0x4000, scoped, tag = 'input window, operand 0']
    #allocation3 [shape = 's32[2]{0}', space=sflag, size = 0x8, scoped, tag = 'scoped memory for tpu_custom_call.1']
    #allocation4 [shape = 's32[2]{0}', space=sflag, size = 0x8, scoped, tag = 'scoped memory for tpu_custom_call.1']
    #allocation5 [shape = 'u8[16384]{0}', space=vmem, size = 0x4000, scoped, tag = 'input window, operand 3, single buffered']
    #allocation6 [shape = 's32[1]{0}', space=sflag, size = 0x4, scoped, tag = 'scoped memory for tpu_custom_call.1']
    #allocation7 [shape = 'u8[65536]{0}', space=vmem, size = 0x10000, scoped, tag = 'input window, operand 5, single buffered']
    #allocation8 [shape = 'u8[16384]{0}', space=vmem, size = 0x4000, scoped, tag = 'output window, operand 0']
    %12 = vsyncpa [#allocation3], 0
    %s13 = scalar_lea.sflag [#allocation3], 1
    %14 = vsyncpa %s13, 0
    %15 = vsyncpa [#allocation6], 0
    %16 = vsyncpa [#allocation4], 0
    %s17 = scalar_lea.sflag [#allocation4], 1
    %18 = vsyncpa %s17, 0
    loop: start=0, step=1, limit=5
    $region2: #{tpu_custom_call.1} parent=1 // loop_pre_header
      _
    $region3: #{tpu_custom_call.1} parent=1 // loop_header
      %s20 = sphi 0, %s24
      %p21 = scmp.ge.s32.totalorder %s20, 5
      %s30 = sphi 0, %s32
      %s33 = sphi 0, %s30
      %s34 = sphi 0, %s33
      %s50 = sphi 0, %s34
      %s56 = sphi 0, %s58
      %s59 = sphi 0, %s56
      %s60 = sphi 0, %s59
      %s76 = sphi 0, %s60
      %s80 = sphi 0, %s80
      %s82 = sphi 0, %s80
      %s83 = sphi 0, %s82
      %s97 = sphi 0, %s83
      %s101 = sphi 0, %s101
      %s103 = sphi 0, %s101
      %s104 = sphi 0, %s103
      %s118 = sphi 0, %s104
      %s122 = sphi 0, %s122
      %s124 = sphi 0, %s122
      %s125 = sphi 0, %s124
      %s139 = sphi 0, %s125
      %s143 = sphi 0, %s143
      %s145 = sphi 0, %s143
      %s146 = sphi 0, %s145
      %s160 = sphi 0, %s146
      %s164 = sphi 0, %s164
      %s166 = sphi 0, %s164
      %s167 = sphi 0, %s166
      %s181 = sphi 0, %s167
      %s187 = sphi 0, %s189
      %s190 = sphi 0, %s187
      %s191 = sphi 0, %s190
      %s207 = sphi 0, %s191
    $region4: #{tpu_custom_call.1} parent=1 // loop_header_branch
      %23 = sbr.rel (%p21) target = $region8
    $region5: #{tpu_custom_call.1} parent=1 // loop_body
      %s25 = ssub.s32 %s20, 1
      %s26 = ssub.s32 %s20, 2
      %s27 = sadd.s32 %s20, 1
      %s28 = ssub.s32 %s20, %s27
      %p29 = scmp.eq.s32.totalorder %s28, 0
      %s31 = sadd.s32 %s30, 1
      %s32 = scalar_select %p29, %s30, %s31
      %p35 = pneg %p29
      %p36 = scmp.eq.s32.totalorder %s20, 2
      %p37 = por %p35, %p36
      %p38 = scmp.ne.s32.totalorder %s30, %s33
      %p39 = scmp.eq.s32.totalorder %s20, 0
      %p40 = por %p38, %p39
      %p41 = scmp.ne.s32.totalorder %s30, %s33
      %p42 = scmp.eq.s32.totalorder %s25, 2
      %p43 = por %p41, %p42
      %p44 = scmp.ne.s32.totalorder %s33, %s34
      %p45 = scmp.eq.s32.totalorder %s25, 0
      %p46 = por %p44, %p45
      %p47 = scmp.ne.s32.totalorder %s33, %s34
      %p48 = scmp.eq.s32.totalorder %s26, 2
      %p49 = por %p47, %p48
      %p51 = scmp.ne.s32.totalorder %s34, %s50
      %p52 = scmp.eq.s32.totalorder %s26, 0
      %p53 = por %p51, %p52
      %s54 = ssub.s32 %s20, %s27
      %p55 = scmp.eq.s32.totalorder %s54, 0
      %s57 = sadd.s32 %s56, 1
      %s58 = scalar_select %p55, %s56, %s57
      %p61 = pneg %p55
      %p62 = scmp.eq.s32.totalorder %s20, 2
      %p63 = por %p61, %p62
      %p64 = scmp.ne.s32.totalorder %s56, %s59
      %p65 = scmp.eq.s32.totalorder %s20, 0
      %p66 = por %p64, %p65
      %p67 = scmp.ne.s32.totalorder %s56, %s59
      %p68 = scmp.eq.s32.totalorder %s25, 2
      %p69 = por %p67, %p68
      %p70 = scmp.ne.s32.totalorder %s59, %s60
      %p71 = scmp.eq.s32.totalorder %s25, 0
      %p72 = por %p70, %p71
      %p73 = scmp.ne.s32.totalorder %s59, %s60
      %p74 = scmp.eq.s32.totalorder %s26, 2
      %p75 = por %p73, %p74
      %p77 = scmp.ne.s32.totalorder %s60, %s76
      %p78 = scmp.eq.s32.totalorder %s26, 0
      %p79 = por %p77, %p78
      %s81 = sadd.s32 %s80, 1
      %p84 = scmp.eq.s32.totalorder %s20, 2
      %p85 = scmp.ne.s32.totalorder %s80, %s82
      %p86 = scmp.eq.s32.totalorder %s20, 0
      %p87 = por %p85, %p86
      %p88 = scmp.ne.s32.totalorder %s80, %s82
      %p89 = scmp.eq.s32.totalorder %s25, 2
      %p90 = por %p88, %p89
      %p91 = scmp.ne.s32.totalorder %s82, %s83
      %p92 = scmp.eq.s32.totalorder %s25, 0
      %p93 = por %p91, %p92
      %p94 = scmp.ne.s32.totalorder %s82, %s83
      %p95 = scmp.eq.s32.totalorder %s26, 2
      %p96 = por %p94, %p95
      %p98 = scmp.ne.s32.totalorder %s83, %s97
      %p99 = scmp.eq.s32.totalorder %s26, 0
      %p100 = por %p98, %p99
      %s102 = sadd.s32 %s101, 1
      %p105 = scmp.eq.s32.totalorder %s20, 2
      %p106 = scmp.ne.s32.totalorder %s101, %s103
      %p107 = scmp.eq.s32.totalorder %s20, 0
      %p108 = por %p106, %p107
      %p109 = scmp.ne.s32.totalorder %s101, %s103
      %p110 = scmp.eq.s32.totalorder %s25, 2
      %p111 = por %p109, %p110
      %p112 = scmp.ne.s32.totalorder %s103, %s104
      %p113 = scmp.eq.s32.totalorder %s25, 0
      %p114 = por %p112, %p113
      %p115 = scmp.ne.s32.totalorder %s103, %s104
      %p116 = scmp.eq.s32.totalorder %s26, 2
      %p117 = por %p115, %p116
      %p119 = scmp.ne.s32.totalorder %s104, %s118
      %p120 = scmp.eq.s32.totalorder %s26, 0
      %p121 = por %p119, %p120
      %s123 = sadd.s32 %s122, 1
      %p126 = scmp.eq.s32.totalorder %s20, 2
      %p127 = scmp.ne.s32.totalorder %s122, %s124
      %p128 = scmp.eq.s32.totalorder %s20, 0
      %p129 = por %p127, %p128
      %p130 = scmp.ne.s32.totalorder %s122, %s124
      %p131 = scmp.eq.s32.totalorder %s25, 2
      %p132 = por %p130, %p131
      %p133 = scmp.ne.s32.totalorder %s124, %s125
      %p134 = scmp.eq.s32.totalorder %s25, 0
      %p135 = por %p133, %p134
      %p136 = scmp.ne.s32.totalorder %s124, %s125
      %p137 = scmp.eq.s32.totalorder %s26, 2
      %p138 = por %p136, %p137
      %p140 = scmp.ne.s32.totalorder %s125, %s139
      %p141 = scmp.eq.s32.totalorder %s26, 0
      %p142 = por %p140, %p141
      %s144 = sadd.s32 %s143, 1
      %p147 = scmp.eq.s32.totalorder %s20, 2
      %p148 = scmp.ne.s32.totalorder %s143, %s145
      %p149 = scmp.eq.s32.totalorder %s20, 0
      %p150 = por %p148, %p149
      %p151 = scmp.ne.s32.totalorder %s143, %s145
      %p152 = scmp.eq.s32.totalorder %s25, 2
      %p153 = por %p151, %p152
      %p154 = scmp.ne.s32.totalorder %s145, %s146
      %p155 = scmp.eq.s32.totalorder %s25, 0
      %p156 = por %p154, %p155
      %p157 = scmp.ne.s32.totalorder %s145, %s146
      %p158 = scmp.eq.s32.totalorder %s26, 2
      %p159 = por %p157, %p158
      %p161 = scmp.ne.s32.totalorder %s146, %s160
      %p162 = scmp.eq.s32.totalorder %s26, 0
      %p163 = por %p161, %p162
      %s165 = sadd.s32 %s164, 1
      %p168 = scmp.eq.s32.totalorder %s20, 2
      %p169 = scmp.ne.s32.totalorder %s164, %s166
      %p170 = scmp.eq.s32.totalorder %s20, 0
      %p171 = por %p169, %p170
      %p172 = scmp.ne.s32.totalorder %s164, %s166
      %p173 = scmp.eq.s32.totalorder %s25, 2
      %p174 = por %p172, %p173
      %p175 = scmp.ne.s32.totalorder %s166, %s167
      %p176 = scmp.eq.s32.totalorder %s25, 0
      %p177 = por %p175, %p176
      %p178 = scmp.ne.s32.totalorder %s166, %s167
      %p179 = scmp.eq.s32.totalorder %s26, 2
      %p180 = por %p178, %p179
      %p182 = scmp.ne.s32.totalorder %s167, %s181
      %p183 = scmp.eq.s32.totalorder %s26, 0
      %p184 = por %p182, %p183
      %s185 = ssub.s32 %s20, %s27
      %p186 = scmp.eq.s32.totalorder %s185, 0
      %s188 = sadd.s32 %s187, 1
      %s189 = scalar_select %p186, %s187, %s188
      %p192 = pneg %p186
      %p193 = scmp.eq.s32.totalorder %s20, 2
      %p194 = por %p192, %p193
      %p195 = scmp.ne.s32.totalorder %s187, %s190
      %p196 = scmp.eq.s32.totalorder %s20, 0
      %p197 = por %p195, %p196
      %p198 = scmp.ne.s32.totalorder %s187, %s190
      %p199 = scmp.eq.s32.totalorder %s25, 2
      %p200 = por %p198, %p199
      %p201 = scmp.ne.s32.totalorder %s190, %s191
      %p202 = scmp.eq.s32.totalorder %s25, 0
      %p203 = por %p201, %p202
      %p204 = scmp.ne.s32.totalorder %s190, %s191
      %p205 = scmp.eq.s32.totalorder %s26, 2
      %p206 = por %p204, %p205
      %p208 = scmp.ne.s32.totalorder %s191, %s207
      %p209 = scmp.eq.s32.totalorder %s26, 0
      %p210 = por %p208, %p209
      %p211 = scmp.le.s32.totalorder 1, %s20
      %p212 = scmp.lt.s32.totalorder %s20, 4
      %p213 = pnand %p211, %p212
      %p214 = pneg %p213
      // Predicated region
      $region9: #{tpu_custom_call.1} parent=5 // pred_check
        _
      $region10: #{tpu_custom_call.1} parent=5 // pred_check_branch
        %216 = sbr.rel (%p213) target = $region12
      $region11: #{tpu_custom_call.1} parent=5 // pred_region
        %s217 = ssub.s32 %s20, 1
        // Predicated region
        $region13: #{tpu_custom_call.1} parent=11 // pred_check
          %p218 = pneg %p93
        $region14: #{tpu_custom_call.1} parent=11 // pred_check_branch
          %220 = sbr.rel (%p218) target = $region16
        $region15: #{tpu_custom_call.1} parent=11 // pred_region
          _
        $region16: #{tpu_custom_call.1} parent=11 // pred_fallthru
          _
        // Predicated region
        $region17: #{tpu_custom_call.1} parent=11 // pred_check
          %p221 = pneg %p114
        $region18: #{tpu_custom_call.1} parent=11 // pred_check_branch
          %223 = sbr.rel (%p221) target = $region20
        $region19: #{tpu_custom_call.1} parent=11 // pred_region
          %s225 = ssub.s32 512, 512
          %226 = vsyncadd [#allocation6], %s225
          %s227 = sshll.u32 [#allocation5], 4
          %s228 = int_to_ptr.vmem [resolvable:$true] %s227
          %233 = dma.hbm_to_vmem [thread:$0]  %s3, 512, %s228, [#allocation6], 128, 128, 8
        $region20: #{tpu_custom_call.1} parent=11 // pred_fallthru
          _
        // Predicated region
        $region21: #{tpu_custom_call.1} parent=11 // pred_check
          %p234 = pneg %p135
        $region22: #{tpu_custom_call.1} parent=11 // pred_check_branch
          %236 = sbr.rel (%p234) target = $region24
        $region23: #{tpu_custom_call.1} parent=11 // pred_region
          _
        $region24: #{tpu_custom_call.1} parent=11 // pred_fallthru
          _
        // Predicated region
        $region25: #{tpu_custom_call.1} parent=11 // pred_check
          %p237 = pneg %p156
        $region26: #{tpu_custom_call.1} parent=11 // pred_check_branch
          %239 = sbr.rel (%p237) target = $region28
        $region27: #{tpu_custom_call.1} parent=11 // pred_region
          %s241 = ssub.s32 2048, 2048
          %242 = vsyncadd [#allocation6], %s241
          %s243 = sshll.u32 [#allocation7], 4
          %s244 = int_to_ptr.vmem [resolvable:$true] %s243
          %249 = dma.hbm_to_vmem [thread:$0]  %s5, 2048, %s244, [#allocation6], 128, 128, 8
        $region28: #{tpu_custom_call.1} parent=11 // pred_fallthru
          _
        // Predicated region
        $region29: #{tpu_custom_call.1} parent=11 // pred_check
          %p250 = pneg %p177
        $region30: #{tpu_custom_call.1} parent=11 // pred_check_branch
          %252 = sbr.rel (%p250) target = $region32
        $region31: #{tpu_custom_call.1} parent=11 // pred_region
          _
        $region32: #{tpu_custom_call.1} parent=11 // pred_fallthru
          _
      $region12: #{tpu_custom_call.1} parent=5 // pred_fallthru
        _
      %p253 = scmp.lt.s32.totalorder %s20, 3
      // Predicated region
      $region33: #{tpu_custom_call.1} parent=5 // pred_check
        %p254 = pneg %p253
      $region34: #{tpu_custom_call.1} parent=5 // pred_check_branch
        %256 = sbr.rel (%p254) target = $region36
      $region35: #{tpu_custom_call.1} parent=5 // pred_region
        // Predicated region
        $region37: #{tpu_custom_call.1} parent=35 // pred_check
          %p257 = pneg %p40
        $region38: #{tpu_custom_call.1} parent=35 // pred_check_branch
          %259 = sbr.rel (%p257) target = $region40
        $region39: #{tpu_custom_call.1} parent=35 // pred_region
          %s260 = sand.u32 %s30, 1
          %s261 = scalar_lea.sflag [#allocation3], %s260
          %s262 = sand.u32 %s30, 1
          %s263 = smul.addr %s262, 16
          %s264 = scalar_lea.vmem [#allocation2], %s263
          %s265 = smul.u32 2, %s20
          %s266 = ssub.s32 5, %s265
          %p267 = scmp.lt.s32.totalorder %s266, 2
          %s268 = scalar_select %p267, %s266, 2
          %s269 = smul.u32 128, %s268
          %s271 = ssub.s32 256, %s269
          %272 = vsyncadd %s261, %s271
          %p273 = scmp.ne.s32.totalorder 0, %s269
          %s274 = smul.addr %s265, 128
          %s275 = scalar_lea.hbm %s0, %s274
          %s276 = smul.u32 8, %s268
          %s277 = sshll.u32 %s264, 4
          %s278 = int_to_ptr.vmem [resolvable:$true] %s277
          %s279 = sshll.u32 %s276, 4
          %283 = dma.hbm_to_vmem [thread:$0]  (%p273), %s275, %s279, %s278, %s261, 128, 128, 8
        $region40: #{tpu_custom_call.1} parent=35 // pred_fallthru
          _
        // Predicated region
        $region41: #{tpu_custom_call.1} parent=35 // pred_check
          %p284 = pneg %p66
        $region42: #{tpu_custom_call.1} parent=35 // pred_check_branch
          %286 = sbr.rel (%p284) target = $region44
        $region43: #{tpu_custom_call.1} parent=35 // pred_region
          %s287 = smul.u32 2, %s20
          %s288 = ssub.s32 5, %s287
          %p289 = scmp.lt.s32.totalorder %s288, 2
          %s290 = scalar_select %p289, %s288, 2
          %s291 = smul.u32 128, %s290
          %p292 = scmp.lt.s32.totalorder %s287, 4
          %s293 = scalar_select %p292, %s287, 4
          %s294 = smul.addr %s293, 8
          %s295 = scalar_lea.vmem %s1, %s294
          %s296 = smul.u32 2, %s20
          %s297 = ssub.s32 5, %s296
          %p298 = scmp.lt.s32.totalorder %s297, 2
          %s299 = scalar_select %p298, %s297, 2
          %s300 = smul.u32 128, %s299
        $region44: #{tpu_custom_call.1} parent=35 // pred_fallthru
          _
      $region36: #{tpu_custom_call.1} parent=5 // pred_fallthru
        _
      %p301 = scmp.le.s32.totalorder 1, %s20
      %p302 = scmp.lt.s32.totalorder %s20, 4
      %p303 = pnand %p301, %p302
      %p304 = pneg %p303
      // Predicated region
      $region45: #{tpu_custom_call.1} parent=5 // pred_check
        _
      $region46: #{tpu_custom_call.1} parent=5 // pred_check_branch
        %306 = sbr.rel (%p303) target = $region48
      $region47: #{tpu_custom_call.1} parent=5 // pred_region
        %s307 = ssub.s32 %s20, 1
        %s308 = sand.u32 %s33, 1
        %s309 = scalar_lea.sflag [#allocation3], %s308
        %s310 = sand.u32 %s33, 1
        %s311 = smul.addr %s310, 16
        %s312 = scalar_lea.vmem [#allocation2], %s311
        // Predicated region
        $region49: #{tpu_custom_call.1} parent=47 // pred_check
          %p313 = pneg %p46
        $region50: #{tpu_custom_call.1} parent=47 // pred_check_branch
          %315 = sbr.rel (%p313) target = $region52
        $region51: #{tpu_custom_call.1} parent=47 // pred_region
          %316 = dma.done %s309, 256
        $region52: #{tpu_custom_call.1} parent=47 // pred_fallthru
          _
        // Predicated region
        $region53: #{tpu_custom_call.1} parent=47 // pred_check
          %p317 = pneg %p114
        $region54: #{tpu_custom_call.1} parent=47 // pred_check_branch
          %319 = sbr.rel (%p317) target = $region56
        $region55: #{tpu_custom_call.1} parent=47 // pred_region
          %320 = dma.done [#allocation6], 512
        $region56: #{tpu_custom_call.1} parent=47 // pred_fallthru
          _
        // Predicated region
        $region57: #{tpu_custom_call.1} parent=47 // pred_check
          %p321 = pneg %p156
        $region58: #{tpu_custom_call.1} parent=47 // pred_check_branch
          %323 = sbr.rel (%p321) target = $region60
        $region59: #{tpu_custom_call.1} parent=47 // pred_region
          %324 = dma.done [#allocation6], 2048
        $region60: #{tpu_custom_call.1} parent=47 // pred_fallthru
          _
        %s325 = sand.u32 %s33, 1
        %s326 = scalar_lea.sflag [#allocation3], %s325
        %s327 = sand.u32 %s33, 1
        %s328 = smul.addr %s327, 16
        %s329 = scalar_lea.vmem [#allocation2], %s328
        %p330 = pneg %p46
        %p331 = pneg %p43
        %s332 = smul.u32 2, %s25
        %s333 = ssub.s32 5, %s332
        %p334 = scmp.lt.s32.totalorder %s333, 2
        %s335 = scalar_select %p334, %s333, 2
        %s336 = smul.u32 128, %s335
        %p337 = scmp.lt.s32.totalorder %s332, 4
        %s338 = scalar_select %p337, %s332, 4
        %s339 = smul.addr %s338, 8
        %s340 = scalar_lea.vmem %s1, %s339
        %p341 = pneg %p72
        %p342 = pneg %p69
        %p343 = pneg %p93
        %p344 = pneg %p90
        %p345 = pneg %p114
        %p346 = pneg %p111
        %p347 = pneg %p135
        %p348 = pneg %p132
        %p349 = pneg %p156
        %p350 = pneg %p153
        %p351 = pneg %p177
        %p352 = pneg %p174
        %p353 = pneg %p203
        %p354 = pneg %p200
        %s355 = sand.u32 %s190, 1
        %s356 = scalar_lea.sflag [#allocation4], %s355
        %s357 = sand.u32 %s190, 1
        %s358 = smul.addr %s357, 16
        %s359 = scalar_lea.vmem [#allocation8], %s358
        %s360 = smul.u32 2, %s25
        %s361 = ssub.s32 5, %s360
        %p362 = scmp.lt.s32.totalorder %s361, 2
        %s363 = scalar_select %p362, %s361, 2
        %s364 = smul.u32 128, %s363
        %s365 = smul.u32 2, %s25
        %s366 = ssub.s32 5, %s365
        %p367 = scmp.lt.s32.totalorder %s366, 2
        %s368 = scalar_select %p367, %s366, 2
        %s369 = smul.u32 128, %s368
        %p370 = scmp.lt.s32.totalorder %s365, 4
        %s371 = scalar_select %p370, %s365, 4
        %s372 = smul.addr %s371, 8
        %s373 = scalar_lea.vmem %s1, %s372
        %s374 = smul.u32 2, %s25
        %s375 = ssub.s32 5, %s374
        %p376 = scmp.lt.s32.totalorder %s375, 2
        %s377 = scalar_select %p376, %s375, 2
        %s378 = smul.u32 128, %s377
        %s379 = smul.u32 2, %s25
        %s380 = ssub.s32 5, %s379
        %p381 = scmp.lt.s32.totalorder %s380, 2
        %s382 = scalar_select %p381, %s380, 2
        %s383 = smul.u32 128, %s382
        %v384 = vld [vmem:[%s312] sm:$0xff]
        %v385 = vld [vmem:[%s312 + $0x8] sm:$0xff]
        %v386 = vld [vmem:[%s373] sm:$0xff]
        %v387 = vld [vmem:[%s373 + $0x8] sm:$0xff]
        %v388 = vld [vmem:[%s2] sm:$0xff]
        %v389 = vld [vmem:[%s2 + $0x8] sm:$0xff]
        %v390 = vld [vmem:[%s2 + $0x10] sm:$0xff]
        %v391 = vld [vmem:[%s2 + $0x18] sm:$0xff]
        %v392 = vld [vmem:[%s2 + $0x20] sm:$0xff]
        %v393 = vld [vmem:[%s2 + $0x28] sm:$0xff]
        %v394 = vld [vmem:[%s2 + $0x30] sm:$0xff]
        %v395 = vld [vmem:[%s2 + $0x38] sm:$0xff]
        %v396 = vld [vmem:[#allocation5] sm:$0xff]
        %v397 = vld [vmem:[#allocation5 + $0x8] sm:$0xff]
        %v398 = vld [vmem:[#allocation5 + $0x10] sm:$0xff]
        %v399 = vld [vmem:[#allocation5 + $0x18] sm:$0xff]
        %vm400 = vcmask 261120
        %v402 = vsel %vm400, %v386, 0
        %v405 = vsel %vm400, %v387, 0
        %407 = vmatprep.subr.mxu0 0.0
        %408 = vmatpush1.msra.mxu0 %v396
        %409 = vmatprep.subr.mxu0 0.0
        %410 = vmatpush1.msra.mxu0 %v397
        %411 = vmatprep.subr.mxu0 0.0
        %412 = vmatpush1.msra.mxu0 %v398
        %413 = vmatprep.subr.mxu0 0.0
        %414 = vmatpush1.msra.mxu0 %v399
        %415 = vmatprep.subr.mxu0 0.0
        %416 = vmatpush1.msra.mxu0 0.0
        %417 = vmatprep.subr.mxu0 0.0
        %418 = vmatpush1.msra.mxu0 0.0
        %419 = vmatprep.subr.mxu0 0.0
        %420 = vmatpush1.msra.mxu0 0.0
        %421 = vmatprep.subr.mxu0 0.0
        %422 = vmatpush1.msra.mxu0 0.0
        %423 = vmatprep.subr.mxu0 0.0
        %424 = vmatpush1.msra.mxu0 0.0
        %425 = vmatprep.subr.mxu0 0.0
        %426 = vmatpush1.msra.mxu0 0.0
        %427 = vmatprep.subr.mxu0 0.0
        %428 = vmatpush1.msra.mxu0 0.0
        %429 = vmatprep.subr.mxu0 0.0
        %430 = vmatpush1.msra.mxu0 0.0
        %431 = vmatprep.subr.mxu0 0.0
        %432 = vmatpush1.msra.mxu0 0.0
        %433 = vmatprep.subr.mxu0 0.0
        %434 = vmatpush1.msra.mxu0 0.0
        %435 = vmatprep.subr.mxu0 0.0
        %436 = vmatpush1.msra.mxu0 0.0
        %437 = vmatprep.subr.mxu0 0.0
        %438 = vmatpush1.msra.mxu0 0.0
        %439 = vmatprep.subr.mxu0 0.0
        %440 = vmatpush1.msra.mxu0 0.0
        %441 = vmatprep.subr.mxu0 0.0
        %442 = vmatpush1.msra.mxu0 0.0
        %443 = vmatprep.subr.mxu0 0.0
        %444 = vmatpush1.msra.mxu0 0.0
        %445 = vmatprep.subr.mxu0 0.0
        %446 = vmatpush1.msra.mxu0 0.0
        %447 = vmatprep.subr.mxu0 0.0
        %448 = vmatpush1.msra.mxu0 0.0
        %449 = vmatprep.subr.mxu0 0.0
        %450 = vmatpush1.msra.mxu0 0.0
        %451 = vmatprep.subr.mxu0 0.0
        %452 = vmatpush1.msra.mxu0 0.0
        %453 = vmatprep.subr.mxu0 0.0
        %454 = vmatpush1.msra.mxu0 0.0
        %455 = vmatprep.subr.mxu0 0.0
        %456 = vmatpush1.msra.mxu0 0.0
        %457 = vmatprep.subr.mxu0 0.0
        %458 = vmatpush1.msra.mxu0 0.0
        %459 = vmatprep.subr.mxu0 0.0
        %460 = vmatpush1.msra.mxu0 0.0
        %461 = vmatprep.subr.mxu0 0.0
        %462 = vmatpush1.msra.mxu0 0.0
        %463 = vmatprep.subr.mxu0 0.0
        %464 = vmatpush1.msra.mxu0 0.0
        %465 = vmatprep.subr.mxu0 0.0
        %466 = vmatpush1.msra.mxu0 0.0
        %467 = vmatprep.subr.mxu0 0.0
        %468 = vmatpush1.msra.mxu0 0.0
        %469 = vmatprep.subr.mxu0 0.0
        %470 = vmatpush1.msra.mxu0 0.0
        %471 = vmatprep.mubr.f32.mxu0 0.0
        %472 = vmatmul.mubr.f32.gmra.mrb[0].mxu0 %v402
        %v473 = vpop.f32.mrb[0].mxu0
        %v474 = vadd.f32 0.0, %v473
        %v475 = vpop.f32.mrb[0].mxu0
        %476 = vmatprep.mubr.f32.mxu0 0.0
        %477 = vmatmul.mubr.f32.gmra.mrb[0].mxu0 %v405
        %v478 = vpop.f32.mrb[0].mxu0
        %v479 = vadd.f32 0.0, %v478
        %v480 = vpop.f32.mrb[0].mxu0
        %481 = vdwg.mxu0
        %vm482 = vcmask 523264
        %v484 = vsel %vm482, %v384, 0
        %v487 = vsel %vm482, %v385, 0
        %489 = vmatprep.subr.mxu0 0.0
        %490 = vmatpush1.msra.mxu0 %v388
        %491 = vmatprep.subr.mxu0 0.0
        %492 = vmatpush1.msra.mxu0 %v389
        %493 = vmatprep.subr.mxu0 0.0
        %494 = vmatpush1.msra.mxu0 %v390
        %495 = vmatprep.subr.mxu0 0.0
        %496 = vmatpush1.msra.mxu0 %v391
        %497 = vmatprep.subr.mxu0 0.0
        %498 = vmatpush1.msra.mxu0 %v392
        %499 = vmatprep.subr.mxu0 0.0
        %500 = vmatpush1.msra.mxu0 %v393
        %501 = vmatprep.subr.mxu0 0.0
        %502 = vmatpush1.msra.mxu0 %v394
        %503 = vmatprep.subr.mxu0 0.0
        %504 = vmatpush1.msra.mxu0 %v395
        %505 = vmatprep.subr.mxu0 0.0
        %506 = vmatpush1.msra.mxu0 0.0
        %507 = vmatprep.subr.mxu0 0.0
        %508 = vmatpush1.msra.mxu0 0.0
        %509 = vmatprep.subr.mxu0 0.0
        %510 = vmatpush1.msra.mxu0 0.0
        %511 = vmatprep.subr.mxu0 0.0
        %512 = vmatpush1.msra.mxu0 0.0
        %513 = vmatprep.subr.mxu0 0.0
        %514 = vmatpush1.msra.mxu0 0.0
        %515 = vmatprep.subr.mxu0 0.0
        %516 = vmatpush1.msra.mxu0 0.0
        %517 = vmatprep.subr.mxu0 0.0
        %518 = vmatpush1.msra.mxu0 0.0
        %519 = vmatprep.subr.mxu0 0.0
        %520 = vmatpush1.msra.mxu0 0.0
        %521 = vmatprep.subr.mxu0 0.0
        %522 = vmatpush1.msra.mxu0 0.0
        %523 = vmatprep.subr.mxu0 0.0
        %524 = vmatpush1.msra.mxu0 0.0
        %525 = vmatprep.subr.mxu0 0.0
        %526 = vmatpush1.msra.mxu0 0.0
        %527 = vmatprep.subr.mxu0 0.0
        %528 = vmatpush1.msra.mxu0 0.0
        %529 = vmatprep.subr.mxu0 0.0
        %530 = vmatpush1.msra.mxu0 0.0
        %531 = vmatprep.subr.mxu0 0.0
        %532 = vmatpush1.msra.mxu0 0.0
        %533 = vmatprep.subr.mxu0 0.0
        %534 = vmatpush1.msra.mxu0 0.0
        %535 = vmatprep.subr.mxu0 0.0
        %536 = vmatpush1.msra.mxu0 0.0
        %537 = vmatprep.subr.mxu0 0.0
        %538 = vmatpush1.msra.mxu0 0.0
        %539 = vmatprep.subr.mxu0 0.0
        %540 = vmatpush1.msra.mxu0 0.0
        %541 = vmatprep.subr.mxu0 0.0
        %542 = vmatpush1.msra.mxu0 0.0
        %543 = vmatprep.subr.mxu0 0.0
        %544 = vmatpush1.msra.mxu0 0.0
        %545 = vmatprep.subr.mxu0 0.0
        %546 = vmatpush1.msra.mxu0 0.0
        %547 = vmatprep.subr.mxu0 0.0
        %548 = vmatpush1.msra.mxu0 0.0
        %549 = vmatprep.subr.mxu0 0.0
        %550 = vmatpush1.msra.mxu0 0.0
        %551 = vmatprep.subr.mxu0 0.0
        %552 = vmatpush1.msra.mxu0 0.0
        %553 = vmatprep.mubr.f32.mxu0 0.0
        %554 = vmatmul.mubr.f32.gmra.mrb[0].mxu0 %v484
        %v555 = vpop.f32.mrb[0].mxu0
        %v556 = vadd.f32 %v474, %v555
        %v557 = vpop.f32.mrb[0].mxu0
        %558 = vmatprep.mubr.f32.mxu0 0.0
        %559 = vmatmul.mubr.f32.gmra.mrb[0].mxu0 %v487
        %v560 = vpop.f32.mrb[0].mxu0
        %v561 = vadd.f32 %v479, %v560
        %v562 = vpop.f32.mrb[0].mxu0
        %563 = vdwg.mxu0
        %v564 = vld [vmem:[%s4] sm:$0x1]
        %v566 = vlaneseq
        %v567 = vshrl.u32 %v566, 7
        %v568 = vsub.s32 0, %v567
        %v569 = vrot.slane %v564, %v568
        %v571 = vadd.f32 %v556, %v569
        %v572 = vadd.f32 %v561, %v569
        %v573 = vmax.f32 %v571, 0.0
        %v574 = vmax.f32 %v572, 0.0
        %v575 = vld [vmem:[#allocation7] sm:$0xff]
        %v576 = vld [vmem:[#allocation7 + $0x8] sm:$0xff]
        %v577 = vld [vmem:[#allocation7 + $0x10] sm:$0xff]
        %v578 = vld [vmem:[#allocation7 + $0x18] sm:$0xff]
        %v579 = vld [vmem:[#allocation7 + $0x20] sm:$0xff]
        %v580 = vld [vmem:[#allocation7 + $0x28] sm:$0xff]
        %v581 = vld [vmem:[#allocation7 + $0x30] sm:$0xff]
        %v582 = vld [vmem:[#allocation7 + $0x38] sm:$0xff]
        %v583 = vld [vmem:[#allocation7 + $0x40] sm:$0xff]
        %v584 = vld [vmem:[#allocation7 + $0x48] sm:$0xff]
        %v585 = vld [vmem:[#allocation7 + $0x50] sm:$0xff]
        %v586 = vld [vmem:[#allocation7 + $0x58] sm:$0xff]
        %v587 = vld [vmem:[#allocation7 + $0x60] sm:$0xff]
        %v588 = vld [vmem:[#allocation7 + $0x68] sm:$0xff]
        %v589 = vld [vmem:[#allocation7 + $0x70] sm:$0xff]
        %v590 = vld [vmem:[#allocation7 + $0x78] sm:$0xff]
        %v591 = vld [vmem:[%s6] sm:$0x1]
        %v593 = vlaneseq
        %v594 = vshrl.u32 %v593, 7
        %v595 = vsub.s32 0, %v594
        %v596 = vrot.slane %v591, %v595
        %598 = vmatprep.subr.mxu0 0.0
        %599 = vmatpush1.msra.mxu0 %v575
        %600 = vmatprep.subr.mxu0 0.0
        %601 = vmatpush1.msra.mxu0 %v576
        %602 = vmatprep.subr.mxu0 0.0
        %603 = vmatpush1.msra.mxu0 %v577
        %604 = vmatprep.subr.mxu0 0.0
        %605 = vmatpush1.msra.mxu0 %v578
        %606 = vmatprep.subr.mxu0 0.0
        %607 = vmatpush1.msra.mxu0 %v579
        %608 = vmatprep.subr.mxu0 0.0
        %609 = vmatpush1.msra.mxu0 %v580
        %610 = vmatprep.subr.mxu0 0.0
        %611 = vmatpush1.msra.mxu0 %v581
        %612 = vmatprep.subr.mxu0 0.0
        %613 = vmatpush1.msra.mxu0 %v582
        %614 = vmatprep.subr.mxu0 0.0
        %615 = vmatpush1.msra.mxu0 %v583
        %616 = vmatprep.subr.mxu0 0.0
        %617 = vmatpush1.msra.mxu0 %v584
        %618 = vmatprep.subr.mxu0 0.0
        %619 = vmatpush1.msra.mxu0 %v585
        %620 = vmatprep.subr.mxu0 0.0
        %621 = vmatpush1.msra.mxu0 %v586
        %622 = vmatprep.subr.mxu0 0.0
        %623 = vmatpush1.msra.mxu0 %v587
        %624 = vmatprep.subr.mxu0 0.0
        %625 = vmatpush1.msra.mxu0 %v588
        %626 = vmatprep.subr.mxu0 0.0
        %627 = vmatpush1.msra.mxu0 %v589
        %628 = vmatprep.subr.mxu0 0.0
        %629 = vmatpush1.msra.mxu0 %v590
        %630 = vmatprep.subr.mxu0 0.0
        %631 = vmatpush1.msra.mxu0 0.0
        %632 = vmatprep.subr.mxu0 0.0
        %633 = vmatpush1.msra.mxu0 0.0
        %634 = vmatprep.subr.mxu0 0.0
        %635 = vmatpush1.msra.mxu0 0.0
        %636 = vmatprep.subr.mxu0 0.0
        %637 = vmatpush1.msra.mxu0 0.0
        %638 = vmatprep.subr.mxu0 0.0
        %639 = vmatpush1.msra.mxu0 0.0
        %640 = vmatprep.subr.mxu0 0.0
        %641 = vmatpush1.msra.mxu0 0.0
        %642 = vmatprep.subr.mxu0 0.0
        %643 = vmatpush1.msra.mxu0 0.0
        %644 = vmatprep.subr.mxu0 0.0
        %645 = vmatpush1.msra.mxu0 0.0
        %646 = vmatprep.subr.mxu0 0.0
        %647 = vmatpush1.msra.mxu0 0.0
        %648 = vmatprep.subr.mxu0 0.0
        %649 = vmatpush1.msra.mxu0 0.0
        %650 = vmatprep.subr.mxu0 0.0
        %651 = vmatpush1.msra.mxu0 0.0
        %652 = vmatprep.subr.mxu0 0.0
        %653 = vmatpush1.msra.mxu0 0.0
        %654 = vmatprep.subr.mxu0 0.0
        %655 = vmatpush1.msra.mxu0 0.0
        %656 = vmatprep.subr.mxu0 0.0
        %657 = vmatpush1.msra.mxu0 0.0
        %658 = vmatprep.subr.mxu0 0.0
        %659 = vmatpush1.msra.mxu0 0.0
        %660 = vmatprep.subr.mxu0 0.0
        %661 = vmatpush1.msra.mxu0 0.0
        %662 = vmatprep.mubr.f32.mxu0 0.0
        %663 = vmatmul.mubr.f32.gmra.mrb[0].mxu0 %v573
        %v664 = vpop.f32.mrb[0].mxu0
        %v665 = vadd.f32 %v596, %v664
        %v666 = vpop.f32.mrb[0].mxu0
        %667 = vmatprep.mubr.f32.mxu0 0.0
        %668 = vmatmul.mubr.f32.gmra.mrb[0].mxu0 %v574
        %v669 = vpop.f32.mrb[0].mxu0
        %v670 = vadd.f32 %v596, %v669
        %v671 = vpop.f32.mrb[0].mxu0
        %672 = vdwg.mxu0
        %673 = vst [vmem:[%s359] sm:$0xff] %v665
        %674 = vst [vmem:[%s359 + $0x8] sm:$0xff] %v670
        %s675 = sand.u32 %s190, 1
        %s676 = scalar_lea.sflag [#allocation4], %s675
        %s677 = sand.u32 %s190, 1
        %s678 = smul.addr %s677, 16
        %s679 = scalar_lea.vmem [#allocation8], %s678
        // Predicated region
        $region61: #{tpu_custom_call.1} parent=47 // pred_check
          %p680 = pneg %p200
        $region62: #{tpu_custom_call.1} parent=47 // pred_check_branch
          %682 = sbr.rel (%p680) target = $region64
        $region63: #{tpu_custom_call.1} parent=47 // pred_region
          %s683 = smul.u32 2, %s25
          %s684 = ssub.s32 5, %s683
          %p685 = scmp.lt.s32.totalorder %s684, 2
          %s686 = scalar_select %p685, %s684, 2
          %s687 = smul.u32 128, %s686
          %s689 = ssub.s32 256, %s687
          %690 = vsyncadd %s676, %s689
          %p691 = scmp.ne.s32.totalorder 0, %s687
          %s692 = smul.addr %s683, 128
          %s693 = scalar_lea.hbm %s7, %s692
          %s694 = smul.u32 8, %s686
          %s695 = sshll.u32 %s679, 4
          %s696 = int_to_ptr.vmem [resolvable:$true] %s695
          %s697 = sshll.u32 %s694, 4
          %701 = dma.vmem_to_hbm [thread:$0]  (%p691), %s696, %s697, %s693, %s676, 128, 128, 8
        $region64: #{tpu_custom_call.1} parent=47 // pred_fallthru
          _
      $region48: #{tpu_custom_call.1} parent=5 // pred_fallthru
        _
      %p702 = scmp.le.s32.totalorder 2, %s20
      // Predicated region
      $region65: #{tpu_custom_call.1} parent=5 // pred_check
        %p703 = pneg %p702
      $region66: #{tpu_custom_call.1} parent=5 // pred_check_branch
        %705 = sbr.rel (%p703) target = $region68
      $region67: #{tpu_custom_call.1} parent=5 // pred_region
        %s706 = ssub.s32 %s20, 2
        // Predicated region
        $region69: #{tpu_custom_call.1} parent=67 // pred_check
          %p707 = pneg %p206
        $region70: #{tpu_custom_call.1} parent=67 // pred_check_branch
          %709 = sbr.rel (%p707) target = $region72
        $region71: #{tpu_custom_call.1} parent=67 // pred_region
          %s710 = sand.u32 %s191, 1
          %s711 = scalar_lea.sflag [#allocation4], %s710
          %s712 = sand.u32 %s191, 1
          %s713 = smul.addr %s712, 16
          %s714 = scalar_lea.vmem [#allocation8], %s713
          %715 = dma.done %s711, 256
        $region72: #{tpu_custom_call.1} parent=67 // pred_fallthru
          _
      $region68: #{tpu_custom_call.1} parent=5 // pred_fallthru
        _
    $region6: #{tpu_custom_call.1} parent=1 // loop_footer
      %s24 = sadd.s32 1, %s20
    $region7: #{tpu_custom_call.1} parent=1 // loop_footer_branch
      %19 = sbr.rel target = $region3
    $region8: #{tpu_custom_call.1} parent=1 // loop_exit
      _
    %716 = vsyncpa [#allocation3], 1
    %s717 = scalar_lea.sflag [#allocation3], 1
    %718 = vsyncpa %s717, 1
    %719 = vsyncpa [#allocation6], 1
    %720 = vsyncpa [#allocation4], 1
    %s721 = scalar_lea.sflag [#allocation4], 1
    %722 = vsyncpa %s721, 1

// kernel: tpu_custom_call.1
$region0: #{tpu_custom_call.1}
  #allocation0 [shape = 'u32[]', space=smem, size = 0x4, offset = 0x4, fixed_abs, tag = 'smem constant byte address 0x4 - core index']
  #allocation1 [shape = 'u32[144,128]{1,0:T(1,128)}', space=vmem, size = 0x12000, scoped, tag = 'internal scratch']
  %s0 = inlined_call_operand.hbm [shape: f32[40,64], index: 0, kind: input, shape index: {}]
  %s1 = inlined_call_operand.vmem [shape: f32[40,32], index: 1, kind: input, shape index: {}]
  %s2 = inlined_call_operand.vmem [shape: f32[64,128], index: 2, kind: input, shape index: {}]
  %s3 = inlined_call_operand.hbm [shape: f32[32,128], index: 3, kind: input, shape index: {}]
  %s4 = inlined_call_operand.vmem [shape: f32[1,128], index: 4, kind: input, shape index: {}]
  %s5 = inlined_call_operand.hbm [shape: f32[128,128], index: 5, kind: input, shape index: {}]
  %s6 = inlined_call_operand.vmem [shape: f32[1,128], index: 6, kind: input, shape index: {}]
  %s7 = inlined_call_operand.hbm [shape: f32[40,128], index: 7, kind: output, shape index: {}]
  %s8 = sld [smem:[#allocation0]]
  $region73: #{tpu_custom_call.1} parent=0
    _
  %s10 = ssub.s32 1, %s8
  %s11 = scalar_select 0, %s10, %s8
  $region1: #{tpu_custom_call.1} parent=0
    #allocation2 [shape = 'u8[16384]{0}', space=vmem, size = 0x4000, scoped, tag = 'input window, operand 0']
    #allocation3 [shape = 's32[2]{0}', space=sflag, size = 0x8, scoped, tag = 'scoped memory for tpu_custom_call.1']
    #allocation4 [shape = 's32[2]{0}', space=sflag, size = 0x8, scoped, tag = 'scoped memory for tpu_custom_call.1']
    #allocation5 [shape = 'u8[16384]{0}', space=vmem, size = 0x4000, scoped, tag = 'input window, operand 3, single buffered']
    #allocation6 [shape = 's32[1]{0}', space=sflag, size = 0x4, scoped, tag = 'scoped memory for tpu_custom_call.1']
    #allocation7 [shape = 'u8[65536]{0}', space=vmem, size = 0x10000, scoped, tag = 'input window, operand 5, single buffered']
    #allocation8 [shape = 'u8[16384]{0}', space=vmem, size = 0x4000, scoped, tag = 'output window, operand 0']
    %12 = vsyncpa [#allocation3], 0
    %s13 = scalar_lea.sflag [#allocation3], 1
    %14 = vsyncpa %s13, 0
    %15 = vsyncpa [#allocation6], 0
    %16 = vsyncpa [#allocation4], 0
    %s17 = scalar_lea.sflag [#allocation4], 1
    %18 = vsyncpa %s17, 0
    loop: start=0, step=1, limit=5
    $region2: #{tpu_custom_call.1} parent=1 // loop_pre_header
      _
    $region3: #{tpu_custom_call.1} parent=1 // loop_header
      %s20 = sphi 0, %s24
      %p21 = scmp.ge.s32.totalorder %s20, 5
      %s30 = sphi 0, %s32
      %s33 = sphi 0, %s30
      %s34 = sphi 0, %s33
      %s50 = sphi 0, %s34
      %s56 = sphi 0, %s58
      %s59 = sphi 0, %s56
      %s60 = sphi 0, %s59
      %s76 = sphi 0, %s60
      %s80 = sphi 0, %s80
      %s82 = sphi 0, %s80
      %s83 = sphi 0, %s82
      %s97 = sphi 0, %s83
      %s101 = sphi 0, %s101
      %s103 = sphi 0, %s101
      %s104 = sphi 0, %s103
      %s118 = sphi 0, %s104
      %s122 = sphi 0, %s122
      %s124 = sphi 0, %s122
      %s125 = sphi 0, %s124
      %s139 = sphi 0, %s125
      %s143 = sphi 0, %s143
      %s145 = sphi 0, %s143
      %s146 = sphi 0, %s145
      %s160 = sphi 0, %s146
      %s164 = sphi 0, %s164
      %s166 = sphi 0, %s164
      %s167 = sphi 0, %s166
      %s181 = sphi 0, %s167
      %s187 = sphi 0, %s189
      %s190 = sphi 0, %s187
      %s191 = sphi 0, %s190
      %s207 = sphi 0, %s191
    $region4: #{tpu_custom_call.1} parent=1 // loop_header_branch
      %23 = sbr.rel (%p21) target = $region8
    $region5: #{tpu_custom_call.1} parent=1 // loop_body
      %s25 = ssub.s32 %s20, 1
      %s26 = ssub.s32 %s20, 2
      %s27 = sadd.s32 %s20, 1
      %s28 = ssub.s32 %s20, %s27
      %p29 = scmp.eq.s32.totalorder %s28, 0
      %s31 = sadd.s32 %s30, 1
      %s32 = scalar_select %p29, %s30, %s31
      %p35 = pneg %p29
      %p36 = scmp.eq.s32.totalorder %s20, 2
      %p37 = por %p35, %p36
      %p38 = scmp.ne.s32.totalorder %s30, %s33
      %p39 = scmp.eq.s32.totalorder %s20, 0
      %p40 = por %p38, %p39
      %p41 = scmp.ne.s32.totalorder %s30, %s33
      %p42 = scmp.eq.s32.totalorder %s25, 2
      %p43 = por %p41, %p42
      %p44 = scmp.ne.s32.totalorder %s33, %s34
      %p45 = scmp.eq.s32.totalorder %s25, 0
      %p46 = por %p44, %p45
      %p47 = scmp.ne.s32.totalorder %s33, %s34
      %p48 = scmp.eq.s32.totalorder %s26, 2
      %p49 = por %p47, %p48
      %p51 = scmp.ne.s32.totalorder %s34, %s50
      %p52 = scmp.eq.s32.totalorder %s26, 0
      %p53 = por %p51, %p52
      %s54 = ssub.s32 %s20, %s27
      %p55 = scmp.eq.s32.totalorder %s54, 0
      %s57 = sadd.s32 %s56, 1
      %s58 = scalar_select %p55, %s56, %s57
      %p61 = pneg %p55
      %p62 = scmp.eq.s32.totalorder %s20, 2
      %p63 = por %p61, %p62
      %p64 = scmp.ne.s32.totalorder %s56, %s59
      %p65 = scmp.eq.s32.totalorder %s20, 0
      %p66 = por %p64, %p65
      %p67 = scmp.ne.s32.totalorder %s56, %s59
      %p68 = scmp.eq.s32.totalorder %s25, 2
      %p69 = por %p67, %p68
      %p70 = scmp.ne.s32.totalorder %s59, %s60
      %p71 = scmp.eq.s32.totalorder %s25, 0
      %p72 = por %p70, %p71
      %p73 = scmp.ne.s32.totalorder %s59, %s60
      %p74 = scmp.eq.s32.totalorder %s26, 2
      %p75 = por %p73, %p74
      %p77 = scmp.ne.s32.totalorder %s60, %s76
      %p78 = scmp.eq.s32.totalorder %s26, 0
      %p79 = por %p77, %p78
      %s81 = sadd.s32 %s80, 1
      %p84 = scmp.eq.s32.totalorder %s20, 2
      %p85 = scmp.ne.s32.totalorder %s80, %s82
      %p86 = scmp.eq.s32.totalorder %s20, 0
      %p87 = por %p85, %p86
      %p88 = scmp.ne.s32.totalorder %s80, %s82
      %p89 = scmp.eq.s32.totalorder %s25, 2
      %p90 = por %p88, %p89
      %p91 = scmp.ne.s32.totalorder %s82, %s83
      %p92 = scmp.eq.s32.totalorder %s25, 0
      %p93 = por %p91, %p92
      %p94 = scmp.ne.s32.totalorder %s82, %s83
      %p95 = scmp.eq.s32.totalorder %s26, 2
      %p96 = por %p94, %p95
      %p98 = scmp.ne.s32.totalorder %s83, %s97
      %p99 = scmp.eq.s32.totalorder %s26, 0
      %p100 = por %p98, %p99
      %s102 = sadd.s32 %s101, 1
      %p105 = scmp.eq.s32.totalorder %s20, 2
      %p106 = scmp.ne.s32.totalorder %s101, %s103
      %p107 = scmp.eq.s32.totalorder %s20, 0
      %p108 = por %p106, %p107
      %p109 = scmp.ne.s32.totalorder %s101, %s103
      %p110 = scmp.eq.s32.totalorder %s25, 2
      %p111 = por %p109, %p110
      %p112 = scmp.ne.s32.totalorder %s103, %s104
      %p113 = scmp.eq.s32.totalorder %s25, 0
      %p114 = por %p112, %p113
      %p115 = scmp.ne.s32.totalorder %s103, %s104
      %p116 = scmp.eq.s32.totalorder %s26, 2
      %p117 = por %p115, %p116
      %p119 = scmp.ne.s32.totalorder %s104, %s118
      %p120 = scmp.eq.s32.totalorder %s26, 0
      %p121 = por %p119, %p120
      %s123 = sadd.s32 %s122, 1
      %p126 = scmp.eq.s32.totalorder %s20, 2
      %p127 = scmp.ne.s32.totalorder %s122, %s124
      %p128 = scmp.eq.s32.totalorder %s20, 0
      %p129 = por %p127, %p128
      %p130 = scmp.ne.s32.totalorder %s122, %s124
      %p131 = scmp.eq.s32.totalorder %s25, 2
      %p132 = por %p130, %p131
      %p133 = scmp.ne.s32.totalorder %s124, %s125
      %p134 = scmp.eq.s32.totalorder %s25, 0
      %p135 = por %p133, %p134
      %p136 = scmp.ne.s32.totalorder %s124, %s125
      %p137 = scmp.eq.s32.totalorder %s26, 2
      %p138 = por %p136, %p137
      %p140 = scmp.ne.s32.totalorder %s125, %s139
      %p141 = scmp.eq.s32.totalorder %s26, 0
      %p142 = por %p140, %p141
      %s144 = sadd.s32 %s143, 1
      %p147 = scmp.eq.s32.totalorder %s20, 2
      %p148 = scmp.ne.s32.totalorder %s143, %s145
      %p149 = scmp.eq.s32.totalorder %s20, 0
      %p150 = por %p148, %p149
      %p151 = scmp.ne.s32.totalorder %s143, %s145
      %p152 = scmp.eq.s32.totalorder %s25, 2
      %p153 = por %p151, %p152
      %p154 = scmp.ne.s32.totalorder %s145, %s146
      %p155 = scmp.eq.s32.totalorder %s25, 0
      %p156 = por %p154, %p155
      %p157 = scmp.ne.s32.totalorder %s145, %s146
      %p158 = scmp.eq.s32.totalorder %s26, 2
      %p159 = por %p157, %p158
      %p161 = scmp.ne.s32.totalorder %s146, %s160
      %p162 = scmp.eq.s32.totalorder %s26, 0
      %p163 = por %p161, %p162
      %s165 = sadd.s32 %s164, 1
      %p168 = scmp.eq.s32.totalorder %s20, 2
      %p169 = scmp.ne.s32.totalorder %s164, %s166
      %p170 = scmp.eq.s32.totalorder %s20, 0
      %p171 = por %p169, %p170
      %p172 = scmp.ne.s32.totalorder %s164, %s166
      %p173 = scmp.eq.s32.totalorder %s25, 2
      %p174 = por %p172, %p173
      %p175 = scmp.ne.s32.totalorder %s166, %s167
      %p176 = scmp.eq.s32.totalorder %s25, 0
      %p177 = por %p175, %p176
      %p178 = scmp.ne.s32.totalorder %s166, %s167
      %p179 = scmp.eq.s32.totalorder %s26, 2
      %p180 = por %p178, %p179
      %p182 = scmp.ne.s32.totalorder %s167, %s181
      %p183 = scmp.eq.s32.totalorder %s26, 0
      %p184 = por %p182, %p183
      %s185 = ssub.s32 %s20, %s27
      %p186 = scmp.eq.s32.totalorder %s185, 0
      %s188 = sadd.s32 %s187, 1
      %s189 = scalar_select %p186, %s187, %s188
      %p192 = pneg %p186
      %p193 = scmp.eq.s32.totalorder %s20, 2
      %p194 = por %p192, %p193
      %p195 = scmp.ne.s32.totalorder %s187, %s190
      %p196 = scmp.eq.s32.totalorder %s20, 0
      %p197 = por %p195, %p196
      %p198 = scmp.ne.s32.totalorder %s187, %s190
      %p199 = scmp.eq.s32.totalorder %s25, 2
      %p200 = por %p198, %p199
      %p201 = scmp.ne.s32.totalorder %s190, %s191
      %p202 = scmp.eq.s32.totalorder %s25, 0
      %p203 = por %p201, %p202
      %p204 = scmp.ne.s32.totalorder %s190, %s191
      %p205 = scmp.eq.s32.totalorder %s26, 2
      %p206 = por %p204, %p205
      %p208 = scmp.ne.s32.totalorder %s191, %s207
      %p209 = scmp.eq.s32.totalorder %s26, 0
      %p210 = por %p208, %p209
      %p211 = scmp.le.s32.totalorder 1, %s20
      %p212 = scmp.lt.s32.totalorder %s20, 4
      %p213 = pnand %p211, %p212
      %p214 = pneg %p213
      // Predicated region
      $region9: #{tpu_custom_call.1} parent=5 // pred_check
        _
      $region10: #{tpu_custom_call.1} parent=5 // pred_check_branch
        %216 = sbr.rel (%p213) target = $region12
      $region11: #{tpu_custom_call.1} parent=5 // pred_region
        %s217 = ssub.s32 %s20, 1
        // Predicated region
        $region13: #{tpu_custom_call.1} parent=11 // pred_check
          %p218 = pneg %p93
        $region14: #{tpu_custom_call.1} parent=11 // pred_check_branch
          %220 = sbr.rel (%p218) target = $region16
        $region15: #{tpu_custom_call.1} parent=11 // pred_region
          _
        $region16: #{tpu_custom_call.1} parent=11 // pred_fallthru
          _
        // Predicated region
        $region17: #{tpu_custom_call.1} parent=11 // pred_check
          %p221 = pneg %p114
        $region18: #{tpu_custom_call.1} parent=11 // pred_check_branch
          %223 = sbr.rel (%p221) target = $region20
        $region19: #{tpu_custom_call.1} parent=11 // pred_region
          %s225 = ssub.s32 512, 512
          %226 = vsyncadd [#allocation6], %s225
          %s227 = sshll.u32 [#allocation5], 4
          %s228 = int_to_ptr.vmem [resolvable:$true] %s227
          %233 = dma.hbm_to_vmem [thread:$0]  %s3, 512, %s228, [#allocation6], 128, 128, 8
        $region20: #{tpu_custom_call.1} parent=11 // pred_fallthru
          _
        // Predicated region
        $region21: #{tpu_custom_call.1} parent=11 // pred_check
          %p234 = pneg %p135
        $region22: #{tpu_custom_call.1} parent=11 // pred_check_branch
          %236 = sbr.rel (%p234) target = $region24
        $region23: #{tpu_custom_call.1} parent=11 // pred_region
          _
        $region24: #{tpu_custom_call.1} parent=11 // pred_fallthru
          _
        // Predicated region
        $region25: #{tpu_custom_call.1} parent=11 // pred_check
          %p237 = pneg %p156
        $region26: #{tpu_custom_call.1} parent=11 // pred_check_branch
          %239 = sbr.rel (%p237) target = $region28
        $region27: #{tpu_custom_call.1} parent=11 // pred_region
          %s241 = ssub.s32 2048, 2048
          %242 = vsyncadd [#allocation6], %s241
          %s243 = sshll.u32 [#allocation7], 4
          %s244 = int_to_ptr.vmem [resolvable:$true] %s243
          %249 = dma.hbm_to_vmem [thread:$0]  %s5, 2048, %s244, [#allocation6], 128, 128, 8
        $region28: #{tpu_custom_call.1} parent=11 // pred_fallthru
          _
        // Predicated region
        $region29: #{tpu_custom_call.1} parent=11 // pred_check
          %p250 = pneg %p177
        $region30: #{tpu_custom_call.1} parent=11 // pred_check_branch
          %252 = sbr.rel (%p250) target = $region32
        $region31: #{tpu_custom_call.1} parent=11 // pred_region
          _
        $region32: #{tpu_custom_call.1} parent=11 // pred_fallthru
          _
      $region12: #{tpu_custom_call.1} parent=5 // pred_fallthru
        _
      %p253 = scmp.lt.s32.totalorder %s20, 3
      // Predicated region
      $region33: #{tpu_custom_call.1} parent=5 // pred_check
        %p254 = pneg %p253
      $region34: #{tpu_custom_call.1} parent=5 // pred_check_branch
        %256 = sbr.rel (%p254) target = $region36
      $region35: #{tpu_custom_call.1} parent=5 // pred_region
        // Predicated region
        $region37: #{tpu_custom_call.1} parent=35 // pred_check
          %p257 = pneg %p40
        $region38: #{tpu_custom_call.1} parent=35 // pred_check_branch
          %259 = sbr.rel (%p257) target = $region40
        $region39: #{tpu_custom_call.1} parent=35 // pred_region
          %s260 = sand.u32 %s30, 1
          %s261 = scalar_lea.sflag [#allocation3], %s260
          %s262 = sand.u32 %s30, 1
          %s263 = smul.addr %s262, 16
          %s264 = scalar_lea.vmem [#allocation2], %s263
          %s265 = smul.u32 2, %s20
          %s266 = ssub.s32 5, %s265
          %p267 = scmp.lt.s32.totalorder %s266, 2
          %s268 = scalar_select %p267, %s266, 2
          %s269 = smul.u32 128, %s268
          %s271 = ssub.s32 256, %s269
          %272 = vsyncadd %s261, %s271
          %p273 = scmp.ne.s32.totalorder 0, %s269
          %s274 = smul.addr %s265, 128
          %s275 = scalar_lea.hbm %s0, %s274
          %s276 = smul.u32 8, %s268
          %s277 = sshll.u32 %s264, 4
          %s278 = int_to_ptr.vmem [resolvable:$true] %s277
          %s279 = sshll.u32 %s276, 4
          %283 = dma.hbm_to_vmem [thread:$0]  (%p273), %s275, %s279, %s278, %s261, 128, 128, 8
        $region40: #{tpu_custom_call.1} parent=35 // pred_fallthru
          _
        // Predicated region
        $region41: #{tpu_custom_call.1} parent=35 // pred_check
          %p284 = pneg %p66
        $region42: #{tpu_custom_call.1} parent=35 // pred_check_branch
          %286 = sbr.rel (%p284) target = $region44
        $region43: #{tpu_custom_call.1} parent=35 // pred_region
          %s287 = smul.u32 2, %s20
          %s288 = ssub.s32 5, %s287
          %p289 = scmp.lt.s32.totalorder %s288, 2
          %s290 = scalar_select %p289, %s288, 2
          %s291 = smul.u32 128, %s290
          %p292 = scmp.lt.s32.totalorder %s287, 4
          %s293 = scalar_select %p292, %s287, 4
          %s294 = smul.addr %s293, 8
          %s295 = scalar_lea.vmem %s1, %s294
          %s296 = smul.u32 2, %s20
          %s297 = ssub.s32 5, %s296
          %p298 = scmp.lt.s32.totalorder %s297, 2
          %s299 = scalar_select %p298, %s297, 2
          %s300 = smul.u32 128, %s299
        $region44: #{tpu_custom_call.1} parent=35 // pred_fallthru
          _
      $region36: #{tpu_custom_call.1} parent=5 // pred_fallthru
        _
      %p301 = scmp.le.s32.totalorder 1, %s20
      %p302 = scmp.lt.s32.totalorder %s20, 4
      %p303 = pnand %p301, %p302
      %p304 = pneg %p303
      // Predicated region
      $region45: #{tpu_custom_call.1} parent=5 // pred_check
        _
      $region46: #{tpu_custom_call.1} parent=5 // pred_check_branch
        %306 = sbr.rel (%p303) target = $region48
      $region47: #{tpu_custom_call.1} parent=5 // pred_region
        %s307 = ssub.s32 %s20, 1
        %s308 = sand.u32 %s33, 1
        %s309 = scalar_lea.sflag [#allocation3], %s308
        %s310 = sand.u32 %s33, 1
        %s311 = smul.addr %s310, 16
        %s312 = scalar_lea.vmem [#allocation2], %s311
        // Predicated region
        $region49: #{tpu_custom_call.1} parent=47 // pred_check
          %p313 = pneg %p46
        $region50: #{tpu_custom_call.1} parent=47 // pred_check_branch
          %315 = sbr.rel (%p313) target = $region52
        $region51: #{tpu_custom_call.1} parent=47 // pred_region
          %316 = dma.done %s309, 256
        $region52: #{tpu_custom_call.1} parent=47 // pred_fallthru
          _
        // Predicated region
        $region53: #{tpu_custom_call.1} parent=47 // pred_check
          %p317 = pneg %p114
        $region54: #{tpu_custom_call.1} parent=47 // pred_check_branch
          %319 = sbr.rel (%p317) target = $region56
        $region55: #{tpu_custom_call.1} parent=47 // pred_region
          %320 = dma.done [#allocation6], 512
        $region56: #{tpu_custom_call.1} parent=47 // pred_fallthru
          _
        // Predicated region
        $region57: #{tpu_custom_call.1} parent=47 // pred_check
          %p321 = pneg %p156
        $region58: #{tpu_custom_call.1} parent=47 // pred_check_branch
          %323 = sbr.rel (%p321) target = $region60
        $region59: #{tpu_custom_call.1} parent=47 // pred_region
          %324 = dma.done [#allocation6], 2048
        $region60: #{tpu_custom_call.1} parent=47 // pred_fallthru
          _
        %s325 = sand.u32 %s33, 1
        %s326 = scalar_lea.sflag [#allocation3], %s325
        %s327 = sand.u32 %s33, 1
        %s328 = smul.addr %s327, 16
        %s329 = scalar_lea.vmem [#allocation2], %s328
        %p330 = pneg %p46
        %p331 = pneg %p43
        %s332 = smul.u32 2, %s25
        %s333 = ssub.s32 5, %s332
        %p334 = scmp.lt.s32.totalorder %s333, 2
        %s335 = scalar_select %p334, %s333, 2
        %s336 = smul.u32 128, %s335
        %p337 = scmp.lt.s32.totalorder %s332, 4
        %s338 = scalar_select %p337, %s332, 4
        %s339 = smul.addr %s338, 8
        %s340 = scalar_lea.vmem %s1, %s339
        %p341 = pneg %p72
        %p342 = pneg %p69
        %p343 = pneg %p93
        %p344 = pneg %p90
        %p345 = pneg %p114
        %p346 = pneg %p111
        %p347 = pneg %p135
        %p348 = pneg %p132
        %p349 = pneg %p156
        %p350 = pneg %p153
        %p351 = pneg %p177
        %p352 = pneg %p174
        %p353 = pneg %p203
        %p354 = pneg %p200
        %s355 = sand.u32 %s190, 1
        %s356 = scalar_lea.sflag [#allocation4], %s355
        %s357 = sand.u32 %s190, 1
        %s358 = smul.addr %s357, 16
        %s359 = scalar_lea.vmem [#allocation8], %s358
        %s360 = smul.u32 2, %s25
        %s361 = ssub.s32 5, %s360
        %p362 = scmp.lt.s32.totalorder %s361, 2
        %s363 = scalar_select %p362, %s361, 2
        %s364 = smul.u32 128, %s363
        %s365 = smul.u32 2, %s25
        %s366 = ssub.s32 5, %s365
        %p367 = scmp.lt.s32.totalorder %s366, 2
        %s368 = scalar_select %p367, %s366, 2
        %s369 = smul.u32 128, %s368
        %p370 = scmp.lt.s32.totalorder %s365, 4
        %s371 = scalar_select %p370, %s365, 4
        %s372 = smul.addr %s371, 8
        %s373 = scalar_lea.vmem %s1, %s372
        %s374 = smul.u32 2, %s25
        %s375 = ssub.s32 5, %s374
        %p376 = scmp.lt.s32.totalorder %s375, 2
        %s377 = scalar_select %p376, %s375, 2
        %s378 = smul.u32 128, %s377
        %s379 = smul.u32 2, %s25
        %s380 = ssub.s32 5, %s379
        %p381 = scmp.lt.s32.totalorder %s380, 2
        %s382 = scalar_select %p381, %s380, 2
        %s383 = smul.u32 128, %s382
        %v384 = vld [vmem:[%s312] sm:$0xff]
        %v385 = vld [vmem:[%s312 + $0x8] sm:$0xff]
        %v386 = vld [vmem:[%s373] sm:$0xff]
        %v387 = vld [vmem:[%s373 + $0x8] sm:$0xff]
        %v388 = vld [vmem:[%s2] sm:$0xff]
        %v389 = vld [vmem:[%s2 + $0x8] sm:$0xff]
        %v390 = vld [vmem:[%s2 + $0x10] sm:$0xff]
        %v391 = vld [vmem:[%s2 + $0x18] sm:$0xff]
        %v392 = vld [vmem:[%s2 + $0x20] sm:$0xff]
        %v393 = vld [vmem:[%s2 + $0x28] sm:$0xff]
        %v394 = vld [vmem:[%s2 + $0x30] sm:$0xff]
        %v395 = vld [vmem:[%s2 + $0x38] sm:$0xff]
        %v396 = vld [vmem:[#allocation5] sm:$0xff]
        %v397 = vld [vmem:[#allocation5 + $0x8] sm:$0xff]
        %v398 = vld [vmem:[#allocation5 + $0x10] sm:$0xff]
        %v399 = vld [vmem:[#allocation5 + $0x18] sm:$0xff]
        %vm400 = vcmask 261120
        %v402 = vsel %vm400, %v386, 0
        %v405 = vsel %vm400, %v387, 0
        %407 = vmatprep.subr.mxu0 0.0
        %408 = vmatpush1.msra.mxu0 %v396
        %409 = vmatprep.subr.mxu0 0.0
        %410 = vmatpush1.msra.mxu0 %v397
        %411 = vmatprep.subr.mxu0 0.0
        %412 = vmatpush1.msra.mxu0 %v398
        %413 = vmatprep.subr.mxu0 0.0
        %414 = vmatpush1.msra.mxu0 %v399
        %415 = vmatprep.subr.mxu0 0.0
        %416 = vmatpush1.msra.mxu0 0.0
        %417 = vmatprep.subr.mxu0 0.0
        %418 = vmatpush1.msra.mxu0 0.0
        %419 = vmatprep.subr.mxu0 0.0
        %420 = vmatpush1.msra.mxu0 0.0
        %421 = vmatprep.subr.mxu0 0.0
        %422 = vmatpush1.msra.mxu0 0.0
        %423 = vmatprep.subr.mxu0 0.0
        %424 = vmatpush1.msra.mxu0 0.0
        %425 = vmatprep.subr.mxu0 0.0
        %426 = vmatpush1.msra.mxu0 0.0
        %427 = vmatprep.subr.mxu0 0.0
        %428 = vmatpush1.msra.mxu0 0.0
        %429 = vmatprep.subr.mxu0 0.0
        %430 = vmatpush1.msra.mxu0 0.0
        %431 = vmatprep.subr.mxu0 0.0
        %432 = vmatpush1.msra.mxu0 0.0
        %433 = vmatprep.subr.mxu0 0.0
        %434 = vmatpush1.msra.mxu0 0.0
        %435 = vmatprep.subr.mxu0 0.0
        %436 = vmatpush1.msra.mxu0 0.0
        %437 = vmatprep.subr.mxu0 0.0
        %438 = vmatpush1.msra.mxu0 0.0
        %439 = vmatprep.subr.mxu0 0.0
        %440 = vmatpush1.msra.mxu0 0.0
        %441 = vmatprep.subr.mxu0 0.0
        %442 = vmatpush1.msra.mxu0 0.0
        %443 = vmatprep.subr.mxu0 0.0
        %444 = vmatpush1.msra.mxu0 0.0
        %445 = vmatprep.subr.mxu0 0.0
        %446 = vmatpush1.msra.mxu0 0.0
        %447 = vmatprep.subr.mxu0 0.0
        %448 = vmatpush1.msra.mxu0 0.0
        %449 = vmatprep.subr.mxu0 0.0
        %450 = vmatpush1.msra.mxu0 0.0
        %451 = vmatprep.subr.mxu0 0.0
        %452 = vmatpush1.msra.mxu0 0.0
        %453 = vmatprep.subr.mxu0 0.0
        %454 = vmatpush1.msra.mxu0 0.0
        %455 = vmatprep.subr.mxu0 0.0
        %456 = vmatpush1.msra.mxu0 0.0
        %457 = vmatprep.subr.mxu0 0.0
        %458 = vmatpush1.msra.mxu0 0.0
        %459 = vmatprep.subr.mxu0 0.0
        %460 = vmatpush1.msra.mxu0 0.0
        %461 = vmatprep.subr.mxu0 0.0
        %462 = vmatpush1.msra.mxu0 0.0
        %463 = vmatprep.subr.mxu0 0.0
        %464 = vmatpush1.msra.mxu0 0.0
        %465 = vmatprep.subr.mxu0 0.0
        %466 = vmatpush1.msra.mxu0 0.0
        %467 = vmatprep.subr.mxu0 0.0
        %468 = vmatpush1.msra.mxu0 0.0
        %469 = vmatprep.subr.mxu0 0.0
        %470 = vmatpush1.msra.mxu0 0.0
        %471 = vmatprep.mubr.f32.mxu0 0.0
        %472 = vmatmul.mubr.f32.gmra.mrb[0].mxu0 %v402
        %v473 = vpop.f32.mrb[0].mxu0
        %v474 = vadd.f32 0.0, %v473
        %v475 = vpop.f32.mrb[0].mxu0
        %476 = vmatprep.mubr.f32.mxu0 0.0
        %477 = vmatmul.mubr.f32.gmra.mrb[0].mxu0 %v405
        %v478 = vpop.f32.mrb[0].mxu0
        %v479 = vadd.f32 0.0, %v478
        %v480 = vpop.f32.mrb[0].mxu0
        %481 = vdwg.mxu0
        %vm482 = vcmask 523264
        %v484 = vsel %vm482, %v384, 0
        %v487 = vsel %vm482, %v385, 0
        %489 = vmatprep.subr.mxu0 0.0
        %490 = vmatpush1.msra.mxu0 %v388
        %491 = vmatprep.subr.mxu0 0.0
        %492 = vmatpush1.msra.mxu0 %v389
        %493 = vmatprep.subr.mxu0 0.0
        %494 = vmatpush1.msra.mxu0 %v390
        %495 = vmatprep.subr.mxu0 0.0
        %496 = vmatpush1.msra.mxu0 %v391
        %497 = vmatprep.subr.mxu0 0.0
        %498 = vmatpush1.msra.mxu0 %v392
        %499 = vmatprep.subr.mxu0 0.0
        %500 = vmatpush1.msra.mxu0 %v393
        %501 = vmatprep.subr.mxu0 0.0
        %502 = vmatpush1.msra.mxu0 %v394
        %503 = vmatprep.subr.mxu0 0.0
        %504 = vmatpush1.msra.mxu0 %v395
        %505 = vmatprep.subr.mxu0 0.0
        %506 = vmatpush1.msra.mxu0 0.0
        %507 = vmatprep.subr.mxu0 0.0
        %508 = vmatpush1.msra.mxu0 0.0
        %509 = vmatprep.subr.mxu0 0.0
        %510 = vmatpush1.msra.mxu0 0.0
        %511 = vmatprep.subr.mxu0 0.0
        %512 = vmatpush1.msra.mxu0 0.0
        %513 = vmatprep.subr.mxu0 0.0
        %514 = vmatpush1.msra.mxu0 0.0
        %515 = vmatprep.subr.mxu0 0.0
        %516 = vmatpush1.msra.mxu0 0.0
        %517 = vmatprep.subr.mxu0 0.0
        %518 = vmatpush1.msra.mxu0 0.0
        %519 = vmatprep.subr.mxu0 0.0
        %520 = vmatpush1.msra.mxu0 0.0
        %521 = vmatprep.subr.mxu0 0.0
        %522 = vmatpush1.msra.mxu0 0.0
        %523 = vmatprep.subr.mxu0 0.0
        %524 = vmatpush1.msra.mxu0 0.0
        %525 = vmatprep.subr.mxu0 0.0
        %526 = vmatpush1.msra.mxu0 0.0
        %527 = vmatprep.subr.mxu0 0.0
        %528 = vmatpush1.msra.mxu0 0.0
        %529 = vmatprep.subr.mxu0 0.0
        %530 = vmatpush1.msra.mxu0 0.0
        %531 = vmatprep.subr.mxu0 0.0
        %532 = vmatpush1.msra.mxu0 0.0
        %533 = vmatprep.subr.mxu0 0.0
        %534 = vmatpush1.msra.mxu0 0.0
        %535 = vmatprep.subr.mxu0 0.0
        %536 = vmatpush1.msra.mxu0 0.0
        %537 = vmatprep.subr.mxu0 0.0
        %538 = vmatpush1.msra.mxu0 0.0
        %539 = vmatprep.subr.mxu0 0.0
        %540 = vmatpush1.msra.mxu0 0.0
        %541 = vmatprep.subr.mxu0 0.0
        %542 = vmatpush1.msra.mxu0 0.0
        %543 = vmatprep.subr.mxu0 0.0
        %544 = vmatpush1.msra.mxu0 0.0
        %545 = vmatprep.subr.mxu0 0.0
        %546 = vmatpush1.msra.mxu0 0.0
        %547 = vmatprep.subr.mxu0 0.0
        %548 = vmatpush1.msra.mxu0 0.0
        %549 = vmatprep.subr.mxu0 0.0
        %550 = vmatpush1.msra.mxu0 0.0
        %551 = vmatprep.subr.mxu0 0.0
        %552 = vmatpush1.msra.mxu0 0.0
        %553 = vmatprep.mubr.f32.mxu0 0.0
        %554 = vmatmul.mubr.f32.gmra.mrb[0].mxu0 %v484
        %v555 = vpop.f32.mrb[0].mxu0
        %v556 = vadd.f32 %v474, %v555
        %v557 = vpop.f32.mrb[0].mxu0
        %558 = vmatprep.mubr.f32.mxu0 0.0
        %559 = vmatmul.mubr.f32.gmra.mrb[0].mxu0 %v487
        %v560 = vpop.f32.mrb[0].mxu0
        %v561 = vadd.f32 %v479, %v560
        %v562 = vpop.f32.mrb[0].mxu0
        %563 = vdwg.mxu0
        %v564 = vld [vmem:[%s4] sm:$0x1]
        %v566 = vlaneseq
        %v567 = vshrl.u32 %v566, 7
        %v568 = vsub.s32 0, %v567
        %v569 = vrot.slane %v564, %v568
        %v571 = vadd.f32 %v556, %v569
        %v572 = vadd.f32 %v561, %v569
        %v573 = vmax.f32 %v571, 0.0
        %v574 = vmax.f32 %v572, 0.0
        %v575 = vld [vmem:[#allocation7] sm:$0xff]
        %v576 = vld [vmem:[#allocation7 + $0x8] sm:$0xff]
        %v577 = vld [vmem:[#allocation7 + $0x10] sm:$0xff]
        %v578 = vld [vmem:[#allocation7 + $0x18] sm:$0xff]
        %v579 = vld [vmem:[#allocation7 + $0x20] sm:$0xff]
        %v580 = vld [vmem:[#allocation7 + $0x28] sm:$0xff]
        %v581 = vld [vmem:[#allocation7 + $0x30] sm:$0xff]
        %v582 = vld [vmem:[#allocation7 + $0x38] sm:$0xff]
        %v583 = vld [vmem:[#allocation7 + $0x40] sm:$0xff]
        %v584 = vld [vmem:[#allocation7 + $0x48] sm:$0xff]
        %v585 = vld [vmem:[#allocation7 + $0x50] sm:$0xff]
        %v586 = vld [vmem:[#allocation7 + $0x58] sm:$0xff]
        %v587 = vld [vmem:[#allocation7 + $0x60] sm:$0xff]
        %v588 = vld [vmem:[#allocation7 + $0x68] sm:$0xff]
        %v589 = vld [vmem:[#allocation7 + $0x70] sm:$0xff]
        %v590 = vld [vmem:[#allocation7 + $0x78] sm:$0xff]
        %v591 = vld [vmem:[%s6] sm:$0x1]
        %v593 = vlaneseq
        %v594 = vshrl.u32 %v593, 7
        %v595 = vsub.s32 0, %v594
        %v596 = vrot.slane %v591, %v595
        %598 = vmatprep.subr.mxu0 0.0
        %599 = vmatpush1.msra.mxu0 %v575
        %600 = vmatprep.subr.mxu0 0.0
        %601 = vmatpush1.msra.mxu0 %v576
        %602 = vmatprep.subr.mxu0 0.0
        %603 = vmatpush1.msra.mxu0 %v577
        %604 = vmatprep.subr.mxu0 0.0
        %605 = vmatpush1.msra.mxu0 %v578
        %606 = vmatprep.subr.mxu0 0.0
        %607 = vmatpush1.msra.mxu0 %v579
        %608 = vmatprep.subr.mxu0 0.0
        %609 = vmatpush1.msra.mxu0 %v580
        %610 = vmatprep.subr.mxu0 0.0
        %611 = vmatpush1.msra.mxu0 %v581
        %612 = vmatprep.subr.mxu0 0.0
        %613 = vmatpush1.msra.mxu0 %v582
        %614 = vmatprep.subr.mxu0 0.0
        %615 = vmatpush1.msra.mxu0 %v583
        %616 = vmatprep.subr.mxu0 0.0
        %617 = vmatpush1.msra.mxu0 %v584
        %618 = vmatprep.subr.mxu0 0.0
        %619 = vmatpush1.msra.mxu0 %v585
        %620 = vmatprep.subr.mxu0 0.0
        %621 = vmatpush1.msra.mxu0 %v586
        %622 = vmatprep.subr.mxu0 0.0
        %623 = vmatpush1.msra.mxu0 %v587
        %624 = vmatprep.subr.mxu0 0.0
        %625 = vmatpush1.msra.mxu0 %v588
        %626 = vmatprep.subr.mxu0 0.0
        %627 = vmatpush1.msra.mxu0 %v589
        %628 = vmatprep.subr.mxu0 0.0
        %629 = vmatpush1.msra.mxu0 %v590
        %630 = vmatprep.subr.mxu0 0.0
        %631 = vmatpush1.msra.mxu0 0.0
        %632 = vmatprep.subr.mxu0 0.0
        %633 = vmatpush1.msra.mxu0 0.0
        %634 = vmatprep.subr.mxu0 0.0
        %635 = vmatpush1.msra.mxu0 0.0
        %636 = vmatprep.subr.mxu0 0.0
        %637 = vmatpush1.msra.mxu0 0.0
        %638 = vmatprep.subr.mxu0 0.0
        %639 = vmatpush1.msra.mxu0 0.0
        %640 = vmatprep.subr.mxu0 0.0
        %641 = vmatpush1.msra.mxu0 0.0
        %642 = vmatprep.subr.mxu0 0.0
        %643 = vmatpush1.msra.mxu0 0.0
        %644 = vmatprep.subr.mxu0 0.0
        %645 = vmatpush1.msra.mxu0 0.0
        %646 = vmatprep.subr.mxu0 0.0
        %647 = vmatpush1.msra.mxu0 0.0
        %648 = vmatprep.subr.mxu0 0.0
        %649 = vmatpush1.msra.mxu0 0.0
        %650 = vmatprep.subr.mxu0 0.0
        %651 = vmatpush1.msra.mxu0 0.0
        %652 = vmatprep.subr.mxu0 0.0
        %653 = vmatpush1.msra.mxu0 0.0
        %654 = vmatprep.subr.mxu0 0.0
        %655 = vmatpush1.msra.mxu0 0.0
        %656 = vmatprep.subr.mxu0 0.0
        %657 = vmatpush1.msra.mxu0 0.0
        %658 = vmatprep.subr.mxu0 0.0
        %659 = vmatpush1.msra.mxu0 0.0
        %660 = vmatprep.subr.mxu0 0.0
        %661 = vmatpush1.msra.mxu0 0.0
        %662 = vmatprep.mubr.f32.mxu0 0.0
        %663 = vmatmul.mubr.f32.gmra.mrb[0].mxu0 %v573
        %v664 = vpop.f32.mrb[0].mxu0
        %v665 = vadd.f32 %v596, %v664
        %v666 = vpop.f32.mrb[0].mxu0
        %667 = vmatprep.mubr.f32.mxu0 0.0
        %668 = vmatmul.mubr.f32.gmra.mrb[0].mxu0 %v574
        %v669 = vpop.f32.mrb[0].mxu0
        %v670 = vadd.f32 %v596, %v669
        %v671 = vpop.f32.mrb[0].mxu0
        %672 = vdwg.mxu0
        %673 = vst [vmem:[%s359] sm:$0xff] %v665
        %674 = vst [vmem:[%s359 + $0x8] sm:$0xff] %v670
        %s675 = sand.u32 %s190, 1
        %s676 = scalar_lea.sflag [#allocation4], %s675
        %s677 = sand.u32 %s190, 1
        %s678 = smul.addr %s677, 16
        %s679 = scalar_lea.vmem [#allocation8], %s678
        // Predicated region
        $region61: #{tpu_custom_call.1} parent=47 // pred_check
          %p680 = pneg %p200
        $region62: #{tpu_custom_call.1} parent=47 // pred_check_branch
          %682 = sbr.rel (%p680) target = $region64
        $region63: #{tpu_custom_call.1} parent=47 // pred_region
          %s683 = smul.u32 2, %s25
          %s684 = ssub.s32 5, %s683
          %p685 = scmp.lt.s32.totalorder %s684, 2
          %s686 = scalar_select %p685, %s684, 2
          %s687 = smul.u32 128, %s686
          %s689 = ssub.s32 256, %s687
          %690 = vsyncadd %s676, %s689
          %p691 = scmp.ne.s32.totalorder 0, %s687
          %s692 = smul.addr %s683, 128
          %s693 = scalar_lea.hbm %s7, %s692
          %s694 = smul.u32 8, %s686
          %s695 = sshll.u32 %s679, 4
          %s696 = int_to_ptr.vmem [resolvable:$true] %s695
          %s697 = sshll.u32 %s694, 4
          %701 = dma.vmem_to_hbm [thread:$0]  (%p691), %s696, %s697, %s693, %s676, 128, 128, 8
        $region64: #{tpu_custom_call.1} parent=47 // pred_fallthru
          _
      $region48: #{tpu_custom_call.1} parent=5 // pred_fallthru
        _
      %p702 = scmp.le.s32.totalorder 2, %s20
      // Predicated region
      $region65: #{tpu_custom_call.1} parent=5 // pred_check
        %p703 = pneg %p702
      $region66: #{tpu_custom_call.1} parent=5 // pred_check_branch
        %705 = sbr.rel (%p703) target = $region68
      $region67: #{tpu_custom_call.1} parent=5 // pred_region
        %s706 = ssub.s32 %s20, 2
        // Predicated region
        $region69: #{tpu_custom_call.1} parent=67 // pred_check
          %p707 = pneg %p206
        $region70: #{tpu_custom_call.1} parent=67 // pred_check_branch
          %709 = sbr.rel (%p707) target = $region72
        $region71: #{tpu_custom_call.1} parent=67 // pred_region
          %s710 = sand.u32 %s191, 1
          %s711 = scalar_lea.sflag [#allocation4], %s710
          %s712 = sand.u32 %s191, 1
          %s713 = smul.addr %s712, 16
          %s714 = scalar_lea.vmem [#allocation8], %s713
          %715 = dma.done %s711, 256
        $region72: #{tpu_custom_call.1} parent=67 // pred_fallthru
          _
      $region68: #{tpu_custom_call.1} parent=5 // pred_fallthru
        _
    $region6: #{tpu_custom_call.1} parent=1 // loop_footer
      %s24 = sadd.s32 1, %s20
    $region7: #{tpu_custom_call.1} parent=1 // loop_footer_branch
      %19 = sbr.rel target = $region3
    $region8: #{tpu_custom_call.1} parent=1 // loop_exit
      _
    %716 = vsyncpa [#allocation3], 1
    %s717 = scalar_lea.sflag [#allocation3], 1
    %718 = vsyncpa %s717, 1
    %719 = vsyncpa [#allocation6], 1
    %720 = vsyncpa [#allocation4], 1
    %s721 = scalar_lea.sflag [#allocation4], 1
    %722 = vsyncpa %s721, 1

</llo_original>
